<compile_context>
chip_gen: v7x
topology: tpu7x:2x2x1
jax: 0.10.0
libtpu: 0.0.40
codegen_flags: <defaults>
</compile_context>

<pallas_src>
import functools

import jax
import jax.numpy as jnp
from jax.experimental import pallas as pl
from jax.experimental.pallas import tpu as pltpu

LANE = 128     # feature (lane) padding granularity
TILE_N = 128   # node-row tile; bump to 256 at scale on v6e/v7x
TILE_E = 128   # hyperedge tile
# Tiles are sized so (inputs x 2 pipeline buffers x tile) stays far below the
# 32 MiB default-scoped VMEM on v6e and the 64 MiB physical VMEM on v7x.
VMEM_LIMIT_BYTES = 32 * 1024 * 1024


def _round_up(x: int, m: int) -> int:
    return (x + m - 1) // m * m


def _pad2(a, rows, cols):
    return jnp.pad(a, ((0, rows - a.shape[0]), (0, cols - a.shape[1])))


# --------------------------------------------------------------------------- #
# Kernel A: hyperedge aggregation  Xe = H^T @ X
#   grid = (edge tiles [parallel], node-reduction tiles [arbitrary, last])
# --------------------------------------------------------------------------- #
def _edge_agg_kernel(h_ref, x_ref, xe_ref, acc_ref):
    @pl.when(pl.program_id(1) == 0)
    def _init():
        acc_ref[...] = jnp.zeros_like(acc_ref)

    # Contract the node axis (axis 0 of both operands) directly on the MXU:
    # no transposed copy of H is ever materialized.
    acc_ref[...] += jax.lax.dot_general(
        h_ref[...], x_ref[...],
        dimension_numbers=(((0,), (0,)), ((), ())),
        preferred_element_type=jnp.float32)

    @pl.when(pl.program_id(1) == pl.num_programs(1) - 1)
    def _finalize():
        xe_ref[...] = acc_ref[...].astype(xe_ref.dtype)


def _edge_aggregate(h_bf16, x_bf16, *, te=TILE_E, tk=TILE_N):
    n_pad, e_pad = h_bf16.shape
    f_pad = x_bf16.shape[1]
    grid = (e_pad // te, n_pad // tk)
    flops = 2 * n_pad * e_pad * f_pad
    bytes_accessed = (2 * n_pad * e_pad                 # H (bf16)
                      + 2 * n_pad * f_pad * grid[0]     # X re-streamed per edge tile
                      + 2 * e_pad * f_pad)              # Xe out (bf16)
    return pl.pallas_call(
        _edge_agg_kernel,
        out_shape=jax.ShapeDtypeStruct((e_pad, f_pad), jnp.bfloat16),
        grid_spec=pltpu.PrefetchScalarGridSpec(
            num_scalar_prefetch=0,
            grid=grid,
            in_specs=[
                pl.BlockSpec((tk, te), lambda e, k: (k, e)),       # H
                pl.BlockSpec((tk, f_pad), lambda e, k: (k, 0)),    # X (bf16)
            ],
            out_specs=pl.BlockSpec((te, f_pad), lambda e, k: (e, 0)),
            scratch_shapes=[pltpu.VMEM((te, f_pad), jnp.float32)]),
        compiler_params=pltpu.CompilerParams(
            dimension_semantics=("parallel", "arbitrary"),
            vmem_limit_bytes=VMEM_LIMIT_BYTES),
        cost_estimate=pl.CostEstimate(flops=int(flops), transcendentals=0,
                                      bytes_accessed=int(bytes_accessed)),
    )(h_bf16, x_bf16)


# --------------------------------------------------------------------------- #
# Kernel B: node aggregation + jump mix + 2-layer MLP + residual
#   Xv = H @ Xe ; Xi = (1-a) Xv + a X0 ; out = (1-b) Xi + b (ReLU(Xi W1+b1) W2+b2)
#   grid = (node tiles [parallel], edge-reduction tiles [arbitrary, last])
# --------------------------------------------------------------------------- #
def _node_update_kernel(alpha, beta, h_ref, xe_ref, x0_ref,
                        w1_ref, b1_ref, w2_ref, b2_ref, o_ref, acc_ref):
    k = pl.program_id(1)

    @pl.when(k == 0)
    def _init():
        acc_ref[...] = jnp.zeros_like(acc_ref)

    # Xv_tile += H[node_tile, edge_tile] @ Xe[edge_tile]   (bf16 MXU, f32 acc)
    acc_ref[...] += jnp.dot(h_ref[...], xe_ref[...],
                            preferred_element_type=jnp.float32)

    @pl.when(k == pl.num_programs(1) - 1)
    def _finalize():
        # Fused epilogue runs once per output tile (not per reduction step),
        # so bias broadcasts / scalar mixes are not re-done along the k axis.
        xi = (1.0 - alpha) * acc_ref[...] + alpha * x0_ref[...]
        h1 = jnp.dot(xi, w1_ref[...], preferred_element_type=jnp.float32) + b1_ref[...]
        h1 = jnp.maximum(h1, 0.0)
        y = jnp.dot(h1, w2_ref[...], preferred_element_type=jnp.float32) + b2_ref[...]
        o_ref[...] = (1.0 - beta) * xi + beta * y


def _node_update(h_bf16, xe_bf16, x0, w1, b1, w2, b2, *, alpha, beta,
                 tm=TILE_N, tk=TILE_E):
    n_pad, e_pad = h_bf16.shape
    f_pad = x0.shape[1]
    grid = (n_pad // tm, e_pad // tk)
    kernel = functools.partial(_node_update_kernel, float(alpha), float(beta))
    flops = 2 * n_pad * e_pad * f_pad + 4 * n_pad * f_pad * f_pad
    bytes_accessed = (2 * n_pad * e_pad                 # H (bf16)
                      + 2 * e_pad * f_pad * grid[0]     # Xe re-streamed per node tile
                      + 4 * n_pad * f_pad               # X0
                      + 8 * f_pad * f_pad               # W1, W2
                      + 4 * n_pad * f_pad)              # out
    return pl.pallas_call(
        kernel,
        out_shape=jax.ShapeDtypeStruct((n_pad, f_pad), jnp.float32),
        grid_spec=pltpu.PrefetchScalarGridSpec(
            num_scalar_prefetch=0,
            grid=grid,
            in_specs=[
                pl.BlockSpec((tm, tk), lambda i, k: (i, k)),         # H
                pl.BlockSpec((tk, f_pad), lambda i, k: (k, 0)),      # Xe
                pl.BlockSpec((tm, f_pad), lambda i, k: (i, 0)),      # X0
                pl.BlockSpec((f_pad, f_pad), lambda i, k: (0, 0)),   # W1
                pl.BlockSpec((1, f_pad), lambda i, k: (0, 0)),       # b1
                pl.BlockSpec((f_pad, f_pad), lambda i, k: (0, 0)),   # W2
                pl.BlockSpec((1, f_pad), lambda i, k: (0, 0)),       # b2
            ],
            out_specs=pl.BlockSpec((tm, f_pad), lambda i, k: (i, 0)),
            scratch_shapes=[pltpu.VMEM((tm, f_pad), jnp.float32)]),
        compiler_params=pltpu.CompilerParams(
            dimension_semantics=("parallel", "arbitrary"),
            vmem_limit_bytes=VMEM_LIMIT_BYTES),
        cost_estimate=pl.CostEstimate(flops=int(flops), transcendentals=0,
                                      bytes_accessed=int(bytes_accessed)),
    )(h_bf16, xe_bf16, x0, w1, b1, w2, b2)


# --------------------------------------------------------------------------- #
# Model glue
# --------------------------------------------------------------------------- #
def build_incidence(vertex, edges, num_nodes, num_edges,
                    *, tile_n=TILE_N, tile_e=TILE_E):
    """Padded bf16 incidence matrix H[v, e] = multiplicity of the (v, e) pair.

    Built once per (static) hypergraph and reused by every layer / forward.
    bf16 represents integer multiplicities exactly up to 256 (asserted).
    """
    n_pad = _round_up(num_nodes, tile_n)
    e_pad = _round_up(num_edges, tile_e)
    h = jnp.zeros((n_pad, e_pad), jnp.float32).at[vertex, edges].add(1.0)
    assert float(jnp.max(h)) <= 256.0, "incidence multiplicity too large for bf16"
    return h.astype(jnp.bfloat16)


def jumplink_conv_padded(xp, h_bf16, x0p, conv_params, *, alpha, beta):
    """One JumpLinkConv layer on the padded [N_pad, F_pad] layout."""
    w1p, b1p, w2p, b2p = conv_params
    xe = _edge_aggregate(h_bf16, xp.astype(jnp.bfloat16))        # Xe = H^T X
    return _node_update(h_bf16, xe, x0p, w1p, b1p, w2p, b2p,     # H Xe + MLP
                        alpha=alpha, beta=beta)


def equiv_set_gnn_forward(x, h_bf16, params, *, nlayer, alpha, beta=1.0):
    """EquivSetGNN.forward (JumpLink conv, ReLU act, eval-mode dropout)."""
    (wl, bl), (w1, b1, w2, b2), (wc1, bc1, wc2, bc2) = params
    n = x.shape[0]
    hidden = wl.shape[1]
    assert w1.shape == (hidden, hidden) and w2.shape == (hidden, hidden), (
        "JumpLink residual mix requires in_features == out_features")
    n_pad, _ = h_bf16.shape
    f_pad = _round_up(hidden, LANE)

    # lin_in + ReLU (plain-JAX glue), then pad ONCE to the lane-dense
    # [N_pad, F_pad] layout; all conv layers stay padded, sliced at the end.
    xh = jnp.maximum(x @ wl + bl, 0.0)
    xp = jnp.zeros((n_pad, f_pad), jnp.float32).at[:n, :hidden].set(xh)
    x0p = xp

    conv_p = (_pad2(w1, f_pad, f_pad),
              _pad2(b1.reshape(1, -1), 1, f_pad),
              _pad2(w2, f_pad, f_pad),
              _pad2(b2.reshape(1, -1), 1, f_pad))

    for _ in range(nlayer):
        xp = jumplink_conv_padded(xp, h_bf16, x0p, conv_p, alpha=alpha, beta=beta)
        xp = jnp.maximum(xp, 0.0)                    # self.act == ReLU

    xh = xp[:n, :hidden]
    # classifier MLP (Linear -> ReLU -> Linear), plain-JAX glue
    hcl = jnp.maximum(xh @ wc1 + bc1, 0.0)
    return hcl @ wc2 + bc2


# --------------------------------------------------------------------------- #
# Pure-JAX reference (f32, segment_sum == torch_scatter 'add')
# --------------------------------------------------------------------------- #
def equiv_set_gnn_ref(x, vertex, edges, params, *, num_edges, nlayer,
                      alpha, beta=1.0):
    (wl, bl), (w1, b1, w2, b2), (wc1, bc1, wc2, bc2) = params
    n = x.shape[0]
    x = jnp.maximum(x @ wl + bl, 0.0)
    x0 = x
    for _ in range(nlayer):
        xve = x[vertex]
        xe = jax.ops.segment_sum(xve, edges, num_segments=num_edges)
        xev = xe[edges]
        xv = jax.ops.segment_sum(xev, vertex, num_segments=n)
        xi = (1.0 - alpha) * xv + alpha * x0
        h = jnp.maximum(xi @ w1 + b1, 0.0)
        y = h @ w2 + b2
        x = (1.0 - beta) * xi + beta * y
        x = jnp.maximum(x, 0.0)
    h = jnp.maximum(x @ wc1 + bc1, 0.0)
    return h @ wc2 + bc2


# --------------------------------------------------------------------------- #
if __name__ == "__main__":
    key = jax.random.PRNGKey(0)
    ks = jax.random.split(key, 14)

    # EquivSetGNN config: edconv_type='JumpLink', activation='relu', eval mode.
    NUM_FEATURES = 26
    HIDDEN = 64          # args.MLP_hidden
    CLF_HIDDEN = 64      # args.Classifier_hidden
    NUM_CLASSES = 6
    NLAYER = 2           # args.All_num_layers
    ALPHA = 0.5          # args.restart_alpha
    BETA = 1.0           # JumpLinkConv.forward default beta

    N, E, NNZ = 300, 200, 900   # vertices, hyperedges, incidence pairs

    x_in = jax.random.normal(ks[0], (N, NUM_FEATURES), jnp.float32)
    vertex = jax.random.randint(ks[1], (NNZ,), 0, N)
    edges = jax.random.randint(ks[2], (NNZ,), 0, E)

    def _linear(kw, kb, fin, fout):
        w = jax.random.normal(kw, (fin, fout), jnp.float32) / jnp.sqrt(fin)
        b = jax.random.normal(kb, (fout,), jnp.float32) * 0.01
        return w, b

    lin_in = _linear(ks[3], ks[4], NUM_FEATURES, HIDDEN)
    conv = _linear(ks[5], ks[6], HIDDEN, HIDDEN) + _linear(ks[7], ks[8], HIDDEN, HIDDEN)
    clf = (_linear(ks[9], ks[10], HIDDEN, CLF_HIDDEN)
           + _linear(ks[11], ks[12], CLF_HIDDEN, NUM_CLASSES))
    params = (lin_in, conv, clf)

    # Dense padded bf16 incidence matrix: built once, reused by every layer.
    H = build_incidence(vertex, edges, N, E)

    fwd = jax.jit(functools.partial(equiv_set_gnn_forward,
                                    nlayer=NLAYER, alpha=ALPHA, beta=BETA))
    out = jax.block_until_ready(fwd(x_in, H, params))

    ref = equiv_set_gnn_ref(x_in, vertex, edges, params,
                            num_edges=E, nlayer=NLAYER, alpha=ALPHA, beta=BETA)

    assert out.shape == (N, NUM_CLASSES)
    # bf16 hyperedge aggregation over two stacked conv layers + classifier,
    # compared against a pure-f32 reference -> mixed-precision tolerance.
    assert jnp.allclose(out, ref, rtol=3e-2, atol=3e-2), "mismatch vs reference"

    print("KERNEL_OK")
</pallas_src>

<mosaic_0001>
module attributes {stable_mosaic.version = 11 : i64} {
  func.func @_node_update_kernel(%arg0: i32, %arg1: i32, %arg2: memref<128x128xbf16, #tpu.memory_space<vmem>>, %arg3: memref<128x128xbf16, #tpu.memory_space<vmem>>, %arg4: memref<128x128xf32, #tpu.memory_space<vmem>>, %arg5: memref<128x128xf32, #tpu.memory_space<vmem>>, %arg6: memref<1x128xf32, #tpu.memory_space<vmem>>, %arg7: memref<128x128xf32, #tpu.memory_space<vmem>>, %arg8: memref<1x128xf32, #tpu.memory_space<vmem>>, %arg9: memref<128x128xf32, #tpu.memory_space<vmem>>, %arg10: memref<128x128xf32, #tpu.memory_space<vmem>>) attributes {dimension_semantics = [#tpu.dimension_semantics<parallel>, #tpu.dimension_semantics<arbitrary>], iteration_bounds = array<i64: 3, 2>, scalar_prefetch = 0 : i64, scratch_operands = 1 : i64, tpu.core_type = #tpu.core_type<tc>, window_params = [{transform_indices = @transform_0, window_bounds = array<i64: 128, 128>}, {transform_indices = @transform_1, window_bounds = array<i64: 128, 128>}, {transform_indices = @transform_2, window_bounds = array<i64: 128, 128>}, {pipeline_mode = #tpu.pipeline_mode<synchronous>, transform_indices = @transform_3, window_bounds = array<i64: 128, 128>}, {pipeline_mode = #tpu.pipeline_mode<synchronous>, transform_indices = @transform_4, window_bounds = array<i64: 1, 128>}, {pipeline_mode = #tpu.pipeline_mode<synchronous>, transform_indices = @transform_5, window_bounds = array<i64: 128, 128>}, {pipeline_mode = #tpu.pipeline_mode<synchronous>, transform_indices = @transform_6, window_bounds = array<i64: 1, 128>}, {transform_indices = @transform_7, window_bounds = array<i64: 128, 128>}]} {
    %c0_i32 = arith.constant 0 : i32
    %0 = arith.cmpi eq, %arg1, %c0_i32 : i32
    %1 = arith.extui %0 : i1 to i32
    %c0_i32_0 = arith.constant 0 : i32
    %2 = arith.cmpi ne, %1, %c0_i32_0 : i32
    scf.if %2 {
      %cst_9 = arith.constant 0.000000e+00 : f32
      %12 = vector.broadcast %cst_9 : f32 to vector<128x128xf32>
      %c0_10 = arith.constant 0 : index
      %c0_11 = arith.constant 0 : index
      %13 = vector.load %arg10[%c0_10, %c0_11] : memref<128x128xf32, #tpu.memory_space<vmem>>, vector<128x128xf32>
      tpu.vector_store %arg10[%c0_10, %c0_11], %12 {strides = array<i32>} : memref<128x128xf32, #tpu.memory_space<vmem>>, vector<128x128xf32>,
    } else {
    }
    %c0 = arith.constant 0 : index
    %c0_1 = arith.constant 0 : index
    %3 = vector.load %arg10[%c0, %c0_1] : memref<128x128xf32, #tpu.memory_space<vmem>>, vector<128x128xf32>
    %c0_2 = arith.constant 0 : index
    %c0_3 = arith.constant 0 : index
    %4 = vector.load %arg2[%c0_2, %c0_3] : memref<128x128xbf16, #tpu.memory_space<vmem>>, vector<128x128xbf16>
    %c0_4 = arith.constant 0 : index
    %c0_5 = arith.constant 0 : index
    %5 = vector.load %arg3[%c0_4, %c0_5] : memref<128x128xbf16, #tpu.memory_space<vmem>>, vector<128x128xbf16>
    %cst = arith.constant dense<0.000000e+00> : vector<128x128xf32>
    %6 = tpu.matmul %4, %5, %cst {dimension_numbers = #tpu.dot_dimension_numbers<[1], [0], [0], [1], [0, 0, 1, 1], [], []>} : vector<128x128xbf16>, vector<128x128xbf16>, vector<128x128xf32> -> vector<128x128xf32>
    %7 = arith.addf %3, %6 : vector<128x128xf32>
    %c0_6 = arith.constant 0 : index
    %c0_7 = arith.constant 0 : index
    %8 = vector.load %arg10[%c0_6, %c0_7] : memref<128x128xf32, #tpu.memory_space<vmem>>, vector<128x128xf32>
    tpu.vector_store %arg10[%c0_6, %c0_7], %7 {strides = array<i32>} : memref<128x128xf32, #tpu.memory_space<vmem>>, vector<128x128xf32>,
    %c1_i32 = arith.constant 1 : i32
    %9 = arith.cmpi eq, %arg1, %c1_i32 : i32
    %10 = arith.extui %9 : i1 to i32
    %c0_i32_8 = arith.constant 0 : i32
    %11 = arith.cmpi ne, %10, %c0_i32_8 : i32
    scf.if %11 {
      %c0_9 = arith.constant 0 : index
      %c0_10 = arith.constant 0 : index
      %12 = vector.load %arg10[%c0_9, %c0_10] : memref<128x128xf32, #tpu.memory_space<vmem>>, vector<128x128xf32>
      %cst_11 = arith.constant 5.000000e-01 : f32
      %13 = vector.broadcast %cst_11 : f32 to vector<128x128xf32>
      %14 = arith.mulf %13, %12 : vector<128x128xf32>
      %c0_12 = arith.constant 0 : index
      %c0_13 = arith.constant 0 : index
      %15 = vector.load %arg4[%c0_12, %c0_13] : memref<128x128xf32, #tpu.memory_space<vmem>>, vector<128x128xf32>
      %cst_14 = arith.constant 5.000000e-01 : f32
      %16 = vector.broadcast %cst_14 : f32 to vector<128x128xf32>
      %17 = arith.mulf %16, %15 : vector<128x128xf32>
      %18 = arith.addf %14, %17 : vector<128x128xf32>
      %c0_15 = arith.constant 0 : index
      %c0_16 = arith.constant 0 : index
      %19 = vector.load %arg5[%c0_15, %c0_16] : memref<128x128xf32, #tpu.memory_space<vmem>>, vector<128x128xf32>
      %cst_17 = arith.constant dense<0.000000e+00> : vector<128x128xf32>
      %20 = tpu.matmul %18, %19, %cst_17 {dimension_numbers = #tpu.dot_dimension_numbers<[1], [0], [0], [1], [0, 0, 1, 1], [], []>} : vector<128x128xf32>, vector<128x128xf32>, vector<128x128xf32> -> vector<128x128xf32>
      %c0_18 = arith.constant 0 : index
      %c0_19 = arith.constant 0 : index
      %21 = vector.load %arg6[%c0_18, %c0_19] : memref<1x128xf32, #tpu.memory_space<vmem>>, vector<1x128xf32>
      %22 = vector.broadcast %21 : vector<1x128xf32> to vector<128x128xf32>
      %23 = arith.addf %20, %22 : vector<128x128xf32>
      %cst_20 = arith.constant 0.000000e+00 : f32
      %24 = vector.broadcast %cst_20 : f32 to vector<128x128xf32>
      %25 = arith.maximumf %23, %24 : vector<128x128xf32>
      %c0_21 = arith.constant 0 : index
      %c0_22 = arith.constant 0 : index
      %26 = vector.load %arg7[%c0_21, %c0_22] : memref<128x128xf32, #tpu.memory_space<vmem>>, vector<128x128xf32>
      %cst_23 = arith.constant dense<0.000000e+00> : vector<128x128xf32>
      %27 = tpu.matmul %25, %26, %cst_23 {dimension_numbers = #tpu.dot_dimension_numbers<[1], [0], [0], [1], [0, 0, 1, 1], [], []>} : vector<128x128xf32>, vector<128x128xf32>, vector<128x128xf32> -> vector<128x128xf32>
      %c0_24 = arith.constant 0 : index
      %c0_25 = arith.constant 0 : index
      %28 = vector.load %arg8[%c0_24, %c0_25] : memref<1x128xf32, #tpu.memory_space<vmem>>, vector<1x128xf32>
      %29 = vector.broadcast %28 : vector<1x128xf32> to vector<128x128xf32>
      %30 = arith.addf %27, %29 : vector<128x128xf32>
      %cst_26 = arith.constant 0.000000e+00 : f32
      %31 = vector.broadcast %cst_26 : f32 to vector<128x128xf32>
      %32 = arith.mulf %31, %18 : vector<128x128xf32>
      %cst_27 = arith.constant 1.000000e+00 : f32
      %33 = vector.broadcast %cst_27 : f32 to vector<128x128xf32>
      %34 = arith.mulf %33, %30 : vector<128x128xf32>
      %35 = arith.addf %32, %34 : vector<128x128xf32>
      %c0_28 = arith.constant 0 : index
      %c0_29 = arith.constant 0 : index
      %36 = vector.load %arg9[%c0_28, %c0_29] : memref<128x128xf32, #tpu.memory_space<vmem>>, vector<128x128xf32>
      tpu.vector_store %arg9[%c0_28, %c0_29], %35 {strides = array<i32>} : memref<128x128xf32, #tpu.memory_space<vmem>>, vector<128x128xf32>,
    } else {
    }
    return
  }
  func.func @transform_0(%arg0: i32, %arg1: i32) -> (i32, i32) {
    %c0_i32 = arith.constant 0 : i32
    return %arg0, %arg1 : i32, i32
  }
  func.func @transform_1(%arg0: i32, %arg1: i32) -> (i32, i32) {
    %c0_i32 = arith.constant 0 : i32
    %c0_i32_0 = arith.constant 0 : i32
    return %arg1, %c0_i32 : i32, i32
  }
  func.func @transform_2(%arg0: i32, %arg1: i32) -> (i32, i32) {
    %c0_i32 = arith.constant 0 : i32
    %c0_i32_0 = arith.constant 0 : i32
    return %arg0, %c0_i32 : i32, i32
  }
  func.func @transform_3(%arg0: i32, %arg1: i32) -> (i32, i32) {
    %c0_i32 = arith.constant 0 : i32
    %c0_i32_0 = arith.constant 0 : i32
    %c0_i32_1 = arith.constant 0 : i32
    return %c0_i32, %c0_i32_0 : i32, i32
  }
  func.func @transform_4(%arg0: i32, %arg1: i32) -> (i32, i32) {
    %c0_i32 = arith.constant 0 : i32
    %c0_i32_0 = arith.constant 0 : i32
    %c0_i32_1 = arith.constant 0 : i32
    return %c0_i32, %c0_i32_0 : i32, i32
  }
  func.func @transform_5(%arg0: i32, %arg1: i32) -> (i32, i32) {
    %c0_i32 = arith.constant 0 : i32
    %c0_i32_0 = arith.constant 0 : i32
    %c0_i32_1 = arith.constant 0 : i32
    return %c0_i32, %c0_i32_0 : i32, i32
  }
  func.func @transform_6(%arg0: i32, %arg1: i32) -> (i32, i32) {
    %c0_i32 = arith.constant 0 : i32
    %c0_i32_0 = arith.constant 0 : i32
    %c0_i32_1 = arith.constant 0 : i32
    return %c0_i32, %c0_i32_0 : i32, i32
  }
  func.func @transform_7(%arg0: i32, %arg1: i32) -> (i32, i32) {
    %c0_i32 = arith.constant 0 : i32
    %c0_i32_0 = arith.constant 0 : i32
    return %arg0, %c0_i32 : i32, i32
  }
}

module attributes {stable_mosaic.version = 11 : i64} {
  func.func @_edge_agg_kernel(%arg0: i32, %arg1: i32, %arg2: memref<128x128xbf16, #tpu.memory_space<vmem>>, %arg3: memref<128x128xbf16, #tpu.memory_space<vmem>>, %arg4: memref<128x128xbf16, #tpu.memory_space<vmem>>, %arg5: memref<128x128xf32, #tpu.memory_space<vmem>>) attributes {dimension_semantics = [#tpu.dimension_semantics<parallel>, #tpu.dimension_semantics<arbitrary>], iteration_bounds = array<i64: 2, 3>, scalar_prefetch = 0 : i64, scratch_operands = 1 : i64, tpu.core_type = #tpu.core_type<tc>, window_params = [{transform_indices = @transform_0, window_bounds = array<i64: 128, 128>}, {transform_indices = @transform_1, window_bounds = array<i64: 128, 128>}, {transform_indices = @transform_2, window_bounds = array<i64: 128, 128>}]} {
    %c0_i32 = arith.constant 0 : i32
    %0 = arith.cmpi eq, %arg1, %c0_i32 : i32
    %1 = arith.extui %0 : i1 to i32
    %c0_i32_0 = arith.constant 0 : i32
    %2 = arith.cmpi ne, %1, %c0_i32_0 : i32
    scf.if %2 {
      %cst_9 = arith.constant 0.000000e+00 : f32
      %12 = vector.broadcast %cst_9 : f32 to vector<128x128xf32>
      %c0_10 = arith.constant 0 : index
      %c0_11 = arith.constant 0 : index
      %13 = vector.load %arg5[%c0_10, %c0_11] : memref<128x128xf32, #tpu.memory_space<vmem>>, vector<128x128xf32>
      tpu.vector_store %arg5[%c0_10, %c0_11], %12 {strides = array<i32>} : memref<128x128xf32, #tpu.memory_space<vmem>>, vector<128x128xf32>,
    } else {
    }
    %c0 = arith.constant 0 : index
    %c0_1 = arith.constant 0 : index
    %3 = vector.load %arg5[%c0, %c0_1] : memref<128x128xf32, #tpu.memory_space<vmem>>, vector<128x128xf32>
    %c0_2 = arith.constant 0 : index
    %c0_3 = arith.constant 0 : index
    %4 = vector.load %arg2[%c0_2, %c0_3] : memref<128x128xbf16, #tpu.memory_space<vmem>>, vector<128x128xbf16>
    %c0_4 = arith.constant 0 : index
    %c0_5 = arith.constant 0 : index
    %5 = vector.load %arg3[%c0_4, %c0_5] : memref<128x128xbf16, #tpu.memory_space<vmem>>, vector<128x128xbf16>
    %cst = arith.constant dense<0.000000e+00> : vector<128x128xf32>
    %6 = tpu.matmul %4, %5, %cst {dimension_numbers = #tpu.dot_dimension_numbers<[0], [0], [1], [1], [0, 1, 1, 1], [], []>} : vector<128x128xbf16>, vector<128x128xbf16>, vector<128x128xf32> -> vector<128x128xf32>
    %7 = arith.addf %3, %6 : vector<128x128xf32>
    %c0_6 = arith.constant 0 : index
    %c0_7 = arith.constant 0 : index
    %8 = vector.load %arg5[%c0_6, %c0_7] : memref<128x128xf32, #tpu.memory_space<vmem>>, vector<128x128xf32>
    tpu.vector_store %arg5[%c0_6, %c0_7], %7 {strides = array<i32>} : memref<128x128xf32, #tpu.memory_space<vmem>>, vector<128x128xf32>,
    %c2_i32 = arith.constant 2 : i32
    %9 = arith.cmpi eq, %arg1, %c2_i32 : i32
    %10 = arith.extui %9 : i1 to i32
    %c0_i32_8 = arith.constant 0 : i32
    %11 = arith.cmpi ne, %10, %c0_i32_8 : i32
    scf.if %11 {
      %c0_9 = arith.constant 0 : index
      %c0_10 = arith.constant 0 : index
      %12 = vector.load %arg5[%c0_9, %c0_10] : memref<128x128xf32, #tpu.memory_space<vmem>>, vector<128x128xf32>
      %13 = arith.truncf %12 : vector<128x128xf32> to vector<128x128xbf16>
      %c0_11 = arith.constant 0 : index
      %c0_12 = arith.constant 0 : index
      %14 = vector.load %arg4[%c0_11, %c0_12] : memref<128x128xbf16, #tpu.memory_space<vmem>>, vector<128x128xbf16>
      tpu.vector_store %arg4[%c0_11, %c0_12], %13 {strides = array<i32>} : memref<128x128xbf16, #tpu.memory_space<vmem>>, vector<128x128xbf16>,
    } else {
    }
    return
  }
  func.func @transform_0(%arg0: i32, %arg1: i32) -> (i32, i32) {
    %c0_i32 = arith.constant 0 : i32
    return %arg1, %arg0 : i32, i32
  }
  func.func @transform_1(%arg0: i32, %arg1: i32) -> (i32, i32) {
    %c0_i32 = arith.constant 0 : i32
    %c0_i32_0 = arith.constant 0 : i32
    return %arg1, %c0_i32 : i32, i32
  }
  func.func @transform_2(%arg0: i32, %arg1: i32) -> (i32, i32) {
    %c0_i32 = arith.constant 0 : i32
    %c0_i32_0 = arith.constant 0 : i32
    return %arg0, %c0_i32 : i32, i32
  }
}

</mosaic_0001>

<llo_original>
// kernel: equiv_set_gnn_forward.4
$region0: #{equiv_set_gnn_forward.4}
  #allocation0 [shape = 'u32[]', space=smem, size = 0x4, offset = 0x4, fixed_abs, tag = 'smem constant byte address 0x4 - core index']
  #allocation1 [shape = 'u32[144,128]{1,0:T(1,128)}', space=vmem, size = 0x12000, scoped, tag = 'internal scratch']
  #allocation2 [shape = 'f32[128,128]{1,0:T(8,128)}', space=vmem, size = 0x10000, scoped, tag = 'scratch operand']
  %s0 = inlined_call_operand.vmem [shape: bf16[384,256], index: 0, kind: input, shape index: {}]
  %s1 = inlined_call_operand.vmem [shape: bf16[384,128], index: 1, kind: input, shape index: {}]
  %s2 = inlined_call_operand.vmem [shape: bf16[256,128], index: 2, kind: output, shape index: {}]
  %s3 = sld [smem:[#allocation0]]
  $region90: #{equiv_set_gnn_forward.4} parent=0
    _
  %s5 = ssub.s32 1, %s3
  %s6 = scalar_select 0, %s5, %s3
  $region1: #{equiv_set_gnn_forward.4} parent=0
    #allocation3 [shape = 'u8[65536]{0}', space=vmem, size = 0x10000, scoped, tag = 'input window, operand 0']
    loop: start=0, step=1, limit=8
    $region2: #{equiv_set_gnn_forward.4} parent=1 // loop_pre_header
      _
    $region3: #{equiv_set_gnn_forward.4} parent=1 // loop_header
      %s8 = sphi 0, %s12
      %p9 = scmp.ge.s32.totalorder %s8, 8
      %s15 = sphi 0, %s27
      %s16 = sphi 0, %s23
      %s17 = sphi 0, %s15
      %s18 = sphi 0, %s16
      %s19 = sphi 0, %s17
      %s20 = sphi 0, %s18
      %s32 = sphi 0, %s34
      %s35 = sphi 0, %s32
      %s36 = sphi 0, %s35
      %s52 = sphi 0, %s36
      %s58 = sphi 0, %s60
      %s61 = sphi 0, %s58
      %s62 = sphi 0, %s61
      %s78 = sphi 0, %s62
      %s84 = sphi 0, %s86
      %s87 = sphi 0, %s84
      %s88 = sphi 0, %s87
      %s104 = sphi 0, %s88
    $region4: #{equiv_set_gnn_forward.4} parent=1 // loop_header_branch
      %11 = sbr.rel (%p9) target = $region8
    $region5: #{equiv_set_gnn_forward.4} parent=1 // loop_body
      %s13 = ssub.s32 %s8, 1
      %s14 = ssub.s32 %s8, 2
      %s21 = sadd.s32 1, %s16
      %p22 = scmp.ge.s32.totalorder %s21, 3
      %s23 = scalar_select %p22, 0, %s21
      %s24 = sadd.s32 1, %s15
      %s25 = scalar_select %p22, %s24, %s15
      %p26 = scmp.ge.s32.totalorder %s25, 2
      %s27 = scalar_select %p26, 0, %s25
      %s28 = ssub.s32 %s16, %s23
      %s29 = ssub.s32 %s15, %s27
      %s30 = sor.u32 %s28, %s29
      %p31 = scmp.eq.s32.totalorder %s30, 0
      %s33 = sadd.s32 %s32, 1
      %s34 = scalar_select %p31, %s32, %s33
      %p37 = pneg %p31
      %p38 = scmp.eq.s32.totalorder %s8, 5
      %p39 = por %p37, %p38
      %p40 = scmp.ne.s32.totalorder %s32, %s35
      %p41 = scmp.eq.s32.totalorder %s8, 0
      %p42 = por %p40, %p41
      %p43 = scmp.ne.s32.totalorder %s32, %s35
      %p44 = scmp.eq.s32.totalorder %s13, 5
      %p45 = por %p43, %p44
      %p46 = scmp.ne.s32.totalorder %s35, %s36
      %p47 = scmp.eq.s32.totalorder %s13, 0
      %p48 = por %p46, %p47
      %p49 = scmp.ne.s32.totalorder %s35, %s36
      %p50 = scmp.eq.s32.totalorder %s14, 5
      %p51 = por %p49, %p50
      %p53 = scmp.ne.s32.totalorder %s36, %s52
      %p54 = scmp.eq.s32.totalorder %s14, 0
      %p55 = por %p53, %p54
      %s56 = ssub.s32 %s16, %s23
      %p57 = scmp.eq.s32.totalorder %s56, 0
      %s59 = sadd.s32 %s58, 1
      %s60 = scalar_select %p57, %s58, %s59
      %p63 = pneg %p57
      %p64 = scmp.eq.s32.totalorder %s8, 5
      %p65 = por %p63, %p64
      %p66 = scmp.ne.s32.totalorder %s58, %s61
      %p67 = scmp.eq.s32.totalorder %s8, 0
      %p68 = por %p66, %p67
      %p69 = scmp.ne.s32.totalorder %s58, %s61
      %p70 = scmp.eq.s32.totalorder %s13, 5
      %p71 = por %p69, %p70
      %p72 = scmp.ne.s32.totalorder %s61, %s62
      %p73 = scmp.eq.s32.totalorder %s13, 0
      %p74 = por %p72, %p73
      %p75 = scmp.ne.s32.totalorder %s61, %s62
      %p76 = scmp.eq.s32.totalorder %s14, 5
      %p77 = por %p75, %p76
      %p79 = scmp.ne.s32.totalorder %s62, %s78
      %p80 = scmp.eq.s32.totalorder %s14, 0
      %p81 = por %p79, %p80
      %s82 = ssub.s32 %s15, %s27
      %p83 = scmp.eq.s32.totalorder %s82, 0
      %s85 = sadd.s32 %s84, 1
      %s86 = scalar_select %p83, %s84, %s85
      %p89 = pneg %p83
      %p90 = scmp.eq.s32.totalorder %s8, 5
      %p91 = por %p89, %p90
      %p92 = scmp.ne.s32.totalorder %s84, %s87
      %p93 = scmp.eq.s32.totalorder %s8, 0
      %p94 = por %p92, %p93
      %p95 = scmp.ne.s32.totalorder %s84, %s87
      %p96 = scmp.eq.s32.totalorder %s13, 5
      %p97 = por %p95, %p96
      %p98 = scmp.ne.s32.totalorder %s87, %s88
      %p99 = scmp.eq.s32.totalorder %s13, 0
      %p100 = por %p98, %p99
      %p101 = scmp.ne.s32.totalorder %s87, %s88
      %p102 = scmp.eq.s32.totalorder %s14, 5
      %p103 = por %p101, %p102
      %p105 = scmp.ne.s32.totalorder %s88, %s104
      %p106 = scmp.eq.s32.totalorder %s14, 0
      %p107 = por %p105, %p106
      %p108 = scmp.le.s32.totalorder 1, %s8
      %p109 = scmp.lt.s32.totalorder %s8, 7
      %p110 = pnand %p108, %p109
      %p111 = pneg %p110
      // Predicated region
      $region9: #{equiv_set_gnn_forward.4} parent=5 // pred_check
        _
      $region10: #{equiv_set_gnn_forward.4} parent=5 // pred_check_branch
        %113 = sbr.rel (%p110) target = $region12
      $region11: #{equiv_set_gnn_forward.4} parent=5 // pred_region
        %s114 = ssub.s32 %s8, 1
      $region12: #{equiv_set_gnn_forward.4} parent=5 // pred_fallthru
        _
      %p115 = scmp.lt.s32.totalorder %s8, 6
      // Predicated region
      $region13: #{equiv_set_gnn_forward.4} parent=5 // pred_check
        %p116 = pneg %p115
      $region14: #{equiv_set_gnn_forward.4} parent=5 // pred_check_branch
        %118 = sbr.rel (%p116) target = $region16
      $region15: #{equiv_set_gnn_forward.4} parent=5 // pred_region
        // Predicated region
        $region17: #{equiv_set_gnn_forward.4} parent=15 // pred_check
          %p119 = pneg %p42
        $region18: #{equiv_set_gnn_forward.4} parent=15 // pred_check_branch
          %121 = sbr.rel (%p119) target = $region20
        $region19: #{equiv_set_gnn_forward.4} parent=15 // pred_region
          %s122 = sand.u32 %s32, 1
          %s123 = sand.u32 %s32, 1
          %s124 = smul.addr %s123, 64
          %s125 = scalar_lea.vmem [#allocation3], %s124
          %s126 = smul.u32 16, %s16
          %s127 = smul.addr %s126, 2
          %s128 = sadd.s32 %s15, %s127
          %s129 = smul.addr %s128, 4
          %s130 = scalar_lea.vmem %s0, %s129
          // Predicated region
          $region21: #{equiv_set_gnn_forward.4} parent=19 // pred_check
            _
          $region22: #{equiv_set_gnn_forward.4} parent=19 // pred_check_branch
            %132 = sbr.rel (0) target = $region24
          $region23: #{equiv_set_gnn_forward.4} parent=19 // pred_region
            // Predicated region
            $region25: #{equiv_set_gnn_forward.4} parent=23 // pred_check
              _
            $region26: #{equiv_set_gnn_forward.4} parent=23 // pred_check_branch
              %134 = sbr.rel target = $region28
            $region27: #{equiv_set_gnn_forward.4} parent=23 // pred_region
              // Predicated region
              $region40: #{equiv_set_gnn_forward.4} parent=27 // pred_check
                _
              $region41: #{equiv_set_gnn_forward.4} parent=27 // pred_check_branch
                %179 = sbr.rel (0) target = $region43
              $region42: #{equiv_set_gnn_forward.4} parent=27 // pred_region
                loop: start=0, step=1, limit=1
                $region44: #{equiv_set_gnn_forward.4} parent=42 // loop_pre_header
                  _
                $region45: #{equiv_set_gnn_forward.4} parent=42 // loop_header
                  %s181 = sphi 0, %s185
                  %p182 = scmp.ge.s32.totalorder %s181, 1
                  %s186 = sphi %s130, %s130
                  %s187 = sphi %s125, %s125
                $region46: #{equiv_set_gnn_forward.4} parent=42 // loop_header_branch
                  %184 = sbr.rel (%p182) target = $region50
                $region47: #{equiv_set_gnn_forward.4} parent=42 // loop_body
                  _
                $region48: #{equiv_set_gnn_forward.4} parent=42 // loop_footer
                  %s185 = sadd.s32 1, %s181
                $region49: #{equiv_set_gnn_forward.4} parent=42 // loop_footer_branch
                  %180 = sbr.rel target = $region45
                $region50: #{equiv_set_gnn_forward.4} parent=42 // loop_exit
                  _
                loop: start=0, step=1, limit=1
                $region51: #{equiv_set_gnn_forward.4} parent=42 // loop_pre_header
                  _
                $region52: #{equiv_set_gnn_forward.4} parent=42 // loop_header
                  %s190 = sphi 0, %s194
                  %p191 = scmp.ge.s32.totalorder %s190, 1
                  %s195 = sphi %s130, %s130
                  %s196 = sphi %s125, %s125
                $region53: #{equiv_set_gnn_forward.4} parent=42 // loop_header_branch
                  %193 = sbr.rel (%p191) target = $region57
                $region54: #{equiv_set_gnn_forward.4} parent=42 // loop_body
                  %v197 = vld [vmem:[%s195] sm:$0xf]
                  %198 = vst [vmem:[%s196] sm:$0xf] %v197
                  %v199 = vld [vmem:[%s195 + $0x8] sm:$0xf]
                  %200 = vst [vmem:[%s196 + $0x4] sm:$0xf] %v199
                  %v201 = vld [vmem:[%s195 + $0x10] sm:$0xf]
                  %202 = vst [vmem:[%s196 + $0x8] sm:$0xf] %v201
                  %v203 = vld [vmem:[%s195 + $0x18] sm:$0xf]
                  %204 = vst [vmem:[%s196 + $0xc] sm:$0xf] %v203
                  %v205 = vld [vmem:[%s195 + $0x20] sm:$0xf]
                  %206 = vst [vmem:[%s196 + $0x10] sm:$0xf] %v205
                  %v207 = vld [vmem:[%s195 + $0x28] sm:$0xf]
                  %208 = vst [vmem:[%s196 + $0x14] sm:$0xf] %v207
                  %v209 = vld [vmem:[%s195 + $0x30] sm:$0xf]
                  %210 = vst [vmem:[%s196 + $0x18] sm:$0xf] %v209
                  %v211 = vld [vmem:[%s195 + $0x38] sm:$0xf]
                  %212 = vst [vmem:[%s196 + $0x1c] sm:$0xf] %v211
                  %v213 = vld [vmem:[%s195 + $0x40] sm:$0xf]
                  %214 = vst [vmem:[%s196 + $0x20] sm:$0xf] %v213
                  %v215 = vld [vmem:[%s195 + $0x48] sm:$0xf]
                  %216 = vst [vmem:[%s196 + $0x24] sm:$0xf] %v215
                  %v217 = vld [vmem:[%s195 + $0x50] sm:$0xf]
                  %218 = vst [vmem:[%s196 + $0x28] sm:$0xf] %v217
                  %v219 = vld [vmem:[%s195 + $0x58] sm:$0xf]
                  %220 = vst [vmem:[%s196 + $0x2c] sm:$0xf] %v219
                  %v221 = vld [vmem:[%s195 + $0x60] sm:$0xf]
                  %222 = vst [vmem:[%s196 + $0x30] sm:$0xf] %v221
                  %v223 = vld [vmem:[%s195 + $0x68] sm:$0xf]
                  %224 = vst [vmem:[%s196 + $0x34] sm:$0xf] %v223
                  %v225 = vld [vmem:[%s195 + $0x70] sm:$0xf]
                  %226 = vst [vmem:[%s196 + $0x38] sm:$0xf] %v225
                  %v227 = vld [vmem:[%s195 + $0x78] sm:$0xf]
                  %228 = vst [vmem:[%s196 + $0x3c] sm:$0xf] %v227
                $region55: #{equiv_set_gnn_forward.4} parent=42 // loop_footer
                  %s194 = sadd.s32 1, %s190
                $region56: #{equiv_set_gnn_forward.4} parent=42 // loop_footer_branch
                  %189 = sbr.rel target = $region52
                $region57: #{equiv_set_gnn_forward.4} parent=42 // loop_exit
                  _
              $region43: #{equiv_set_gnn_forward.4} parent=27 // pred_fallthru
                _
            $region28: #{equiv_set_gnn_forward.4} parent=23 // pred_fallthru
              _
            // Predicated region
            $region29: #{equiv_set_gnn_forward.4} parent=23 // pred_check
              _
            $region30: #{equiv_set_gnn_forward.4} parent=23 // pred_check_branch
              %136 = sbr.rel (0) target = $region32
            $region31: #{equiv_set_gnn_forward.4} parent=23 // pred_region
              loop: start=0, step=1, limit=1
              $region33: #{equiv_set_gnn_forward.4} parent=31 // loop_pre_header
                _
              $region34: #{equiv_set_gnn_forward.4} parent=31 // loop_header
                %s139 = sphi 0, %s143
                %p140 = scmp.ge.s32.totalorder %s139, 1
                %s144 = sphi %s130, %s130
                %s145 = sphi %s125, %s125
              $region35: #{equiv_set_gnn_forward.4} parent=31 // loop_header_branch
                %142 = sbr.rel (%p140) target = $region39
              $region36: #{equiv_set_gnn_forward.4} parent=31 // loop_body
                %v146 = vld [vmem:[%s144] sm:$0xf]
                %147 = vst [vmem:[%s145] sm:$0xf] %v146
                %v148 = vld [vmem:[%s144 + $0x8] sm:$0xf]
                %149 = vst [vmem:[%s145 + $0x4] sm:$0xf] %v148
                %v150 = vld [vmem:[%s144 + $0x10] sm:$0xf]
                %151 = vst [vmem:[%s145 + $0x8] sm:$0xf] %v150
                %v152 = vld [vmem:[%s144 + $0x18] sm:$0xf]
                %153 = vst [vmem:[%s145 + $0xc] sm:$0xf] %v152
                %v154 = vld [vmem:[%s144 + $0x20] sm:$0xf]
                %155 = vst [vmem:[%s145 + $0x10] sm:$0xf] %v154
                %v156 = vld [vmem:[%s144 + $0x28] sm:$0xf]
                %157 = vst [vmem:[%s145 + $0x14] sm:$0xf] %v156
                %v158 = vld [vmem:[%s144 + $0x30] sm:$0xf]
                %159 = vst [vmem:[%s145 + $0x18] sm:$0xf] %v158
                %v160 = vld [vmem:[%s144 + $0x38] sm:$0xf]
                %161 = vst [vmem:[%s145 + $0x1c] sm:$0xf] %v160
                %v162 = vld [vmem:[%s144 + $0x40] sm:$0xf]
                %163 = vst [vmem:[%s145 + $0x20] sm:$0xf] %v162
                %v164 = vld [vmem:[%s144 + $0x48] sm:$0xf]
                %165 = vst [vmem:[%s145 + $0x24] sm:$0xf] %v164
                %v166 = vld [vmem:[%s144 + $0x50] sm:$0xf]
                %167 = vst [vmem:[%s145 + $0x28] sm:$0xf] %v166
                %v168 = vld [vmem:[%s144 + $0x58] sm:$0xf]
                %169 = vst [vmem:[%s145 + $0x2c] sm:$0xf] %v168
                %v170 = vld [vmem:[%s144 + $0x60] sm:$0xf]
                %171 = vst [vmem:[%s145 + $0x30] sm:$0xf] %v170
                %v172 = vld [vmem:[%s144 + $0x68] sm:$0xf]
                %173 = vst [vmem:[%s145 + $0x34] sm:$0xf] %v172
                %v174 = vld [vmem:[%s144 + $0x70] sm:$0xf]
                %175 = vst [vmem:[%s145 + $0x38] sm:$0xf] %v174
                %v176 = vld [vmem:[%s144 + $0x78] sm:$0xf]
                %177 = vst [vmem:[%s145 + $0x3c] sm:$0xf] %v176
              $region37: #{equiv_set_gnn_forward.4} parent=31 // loop_footer
                %s143 = sadd.s32 1, %s139
              $region38: #{equiv_set_gnn_forward.4} parent=31 // loop_footer_branch
                %138 = sbr.rel target = $region34
              $region39: #{equiv_set_gnn_forward.4} parent=31 // loop_exit
                _
            $region32: #{equiv_set_gnn_forward.4} parent=23 // pred_fallthru
              _
          $region24: #{equiv_set_gnn_forward.4} parent=19 // pred_fallthru
            _
          %229 = vnop
        $region20: #{equiv_set_gnn_forward.4} parent=15 // pred_fallthru
          _
        // Predicated region
        $region58: #{equiv_set_gnn_forward.4} parent=15 // pred_check
          %p230 = pneg %p68
        $region59: #{equiv_set_gnn_forward.4} parent=15 // pred_check_branch
          %232 = sbr.rel (%p230) target = $region61
        $region60: #{equiv_set_gnn_forward.4} parent=15 // pred_region
          %s233 = smul.u32 16, %s16
          %p234 = scmp.lt.s32.totalorder %s233, 47
          %s235 = scalar_select %p234, %s233, 47
          %s236 = smul.addr %s235, 4
          %s237 = scalar_lea.vmem %s1, %s236
          %s238 = smul.u32 16, %s16
        $region61: #{equiv_set_gnn_forward.4} parent=15 // pred_fallthru
          _
      $region16: #{equiv_set_gnn_forward.4} parent=5 // pred_fallthru
        _
      %p239 = scmp.le.s32.totalorder 1, %s8
      %p240 = scmp.lt.s32.totalorder %s8, 7
      %p241 = pnand %p239, %p240
      %p242 = pneg %p241
      // Predicated region
      $region62: #{equiv_set_gnn_forward.4} parent=5 // pred_check
        _
      $region63: #{equiv_set_gnn_forward.4} parent=5 // pred_check_branch
        %244 = sbr.rel (%p241) target = $region65
      $region64: #{equiv_set_gnn_forward.4} parent=5 // pred_region
        %s245 = ssub.s32 %s8, 1
        %s246 = sand.u32 %s35, 1
        %s247 = sand.u32 %s35, 1
        %s248 = smul.addr %s247, 64
        %s249 = scalar_lea.vmem [#allocation3], %s248
        // Predicated region
        $region66: #{equiv_set_gnn_forward.4} parent=64 // pred_check
          %p250 = pneg %p48
        $region67: #{equiv_set_gnn_forward.4} parent=64 // pred_check_branch
          %252 = sbr.rel (%p250) target = $region69
        $region68: #{equiv_set_gnn_forward.4} parent=64 // pred_region
          _
        $region69: #{equiv_set_gnn_forward.4} parent=64 // pred_fallthru
          _
        %s253 = sand.u32 %s35, 1
        %s254 = sand.u32 %s35, 1
        %s255 = smul.addr %s254, 64
        %s256 = scalar_lea.vmem [#allocation3], %s255
        %p257 = pneg %p48
        %p258 = pneg %p45
        %s259 = smul.u32 16, %s18
        %p260 = scmp.lt.s32.totalorder %s259, 47
        %s261 = scalar_select %p260, %s259, 47
        %s262 = smul.addr %s261, 4
        %s263 = scalar_lea.vmem %s1, %s262
        %p264 = pneg %p74
        %p265 = pneg %p71
        %p266 = pneg %p100
        %p267 = pneg %p97
        %s268 = smul.u32 16, %s17
        %p269 = scmp.lt.s32.totalorder %s268, 31
        %s270 = scalar_select %p269, %s268, 31
        %s271 = smul.addr %s270, 4
        %s272 = scalar_lea.vmem %s2, %s271
        %s273 = smul.u32 16, %s18
        %s274 = smul.u32 16, %s18
        %p275 = scmp.lt.s32.totalorder %s274, 47
        %s276 = scalar_select %p275, %s274, 47
        %s277 = smul.addr %s276, 4
        %s278 = scalar_lea.vmem %s1, %s277
        %s279 = smul.u32 16, %s18
        %s280 = smul.u32 16, %s17
        %p281 = scmp.lt.s32.totalorder %s280, 31
        %s282 = scalar_select %p281, %s280, 31
        %s283 = smul.addr %s282, 4
        %s284 = scalar_lea.vmem %s2, %s283
        %s285 = smul.u32 16, %s17
        %p287 = scmp.eq.s32.totalorder %s18, 0
        // Predicated region
        $region70: #{equiv_set_gnn_forward.4} parent=64 // pred_check
          %p288 = pneg %p287
        $region71: #{equiv_set_gnn_forward.4} parent=64 // pred_check_branch
          %290 = sbr.rel (%p288) target = $region73
        $region72: #{equiv_set_gnn_forward.4} parent=64 // pred_region
          %291 = vst [vmem:[#allocation2] sm:$0xff] 0.0
          %292 = vst [vmem:[#allocation2 + $0x8] sm:$0xff] 0.0
          %293 = vst [vmem:[#allocation2 + $0x10] sm:$0xff] 0.0
          %294 = vst [vmem:[#allocation2 + $0x18] sm:$0xff] 0.0
          %295 = vst [vmem:[#allocation2 + $0x20] sm:$0xff] 0.0
          %296 = vst [vmem:[#allocation2 + $0x28] sm:$0xff] 0.0
          %297 = vst [vmem:[#allocation2 + $0x30] sm:$0xff] 0.0
          %298 = vst [vmem:[#allocation2 + $0x38] sm:$0xff] 0.0
          %299 = vst [vmem:[#allocation2 + $0x40] sm:$0xff] 0.0
          %300 = vst [vmem:[#allocation2 + $0x48] sm:$0xff] 0.0
          %301 = vst [vmem:[#allocation2 + $0x50] sm:$0xff] 0.0
          %302 = vst [vmem:[#allocation2 + $0x58] sm:$0xff] 0.0
          %303 = vst [vmem:[#allocation2 + $0x60] sm:$0xff] 0.0
          %304 = vst [vmem:[#allocation2 + $0x68] sm:$0xff] 0.0
          %305 = vst [vmem:[#allocation2 + $0x70] sm:$0xff] 0.0
          %306 = vst [vmem:[#allocation2 + $0x78] sm:$0xff] 0.0
        $region73: #{equiv_set_gnn_forward.4} parent=64 // pred_fallthru
          _
        %v307 = vld [vmem:[#allocation2] sm:$0xff]
        %v308 = vld [vmem:[#allocation2 + $0x8] sm:$0xff]
        %v309 = vld [vmem:[#allocation2 + $0x10] sm:$0xff]
        %v310 = vld [vmem:[#allocation2 + $0x18] sm:$0xff]
        %v311 = vld [vmem:[#allocation2 + $0x20] sm:$0xff]
        %v312 = vld [vmem:[#allocation2 + $0x28] sm:$0xff]
        %v313 = vld [vmem:[#allocation2 + $0x30] sm:$0xff]
        %v314 = vld [vmem:[#allocation2 + $0x38] sm:$0xff]
        %v315 = vld [vmem:[#allocation2 + $0x40] sm:$0xff]
        %v316 = vld [vmem:[#allocation2 + $0x48] sm:$0xff]
        %v317 = vld [vmem:[#allocation2 + $0x50] sm:$0xff]
        %v318 = vld [vmem:[#allocation2 + $0x58] sm:$0xff]
        %v319 = vld [vmem:[#allocation2 + $0x60] sm:$0xff]
        %v320 = vld [vmem:[#allocation2 + $0x68] sm:$0xff]
        %v321 = vld [vmem:[#allocation2 + $0x70] sm:$0xff]
        %v322 = vld [vmem:[#allocation2 + $0x78] sm:$0xff]
        %v323 = vld [vmem:[%s249] sm:$0xf]
        %v324 = vld [vmem:[%s249 + $0x4] sm:$0xf]
        %v325 = vld [vmem:[%s249 + $0x8] sm:$0xf]
        %v326 = vld [vmem:[%s249 + $0xc] sm:$0xf]
        %v327 = vld [vmem:[%s249 + $0x10] sm:$0xf]
        %v328 = vld [vmem:[%s249 + $0x14] sm:$0xf]
        %v329 = vld [vmem:[%s249 + $0x18] sm:$0xf]
        %v330 = vld [vmem:[%s249 + $0x1c] sm:$0xf]
        %v331 = vld [vmem:[%s249 + $0x20] sm:$0xf]
        %v332 = vld [vmem:[%s249 + $0x24] sm:$0xf]
        %v333 = vld [vmem:[%s249 + $0x28] sm:$0xf]
        %v334 = vld [vmem:[%s249 + $0x2c] sm:$0xf]
        %v335 = vld [vmem:[%s249 + $0x30] sm:$0xf]
        %v336 = vld [vmem:[%s249 + $0x34] sm:$0xf]
        %v337 = vld [vmem:[%s249 + $0x38] sm:$0xf]
        %v338 = vld [vmem:[%s249 + $0x3c] sm:$0xf]
        %v339 = vld [vmem:[%s278] sm:$0xf]
        %v340 = vld [vmem:[%s278 + $0x4] sm:$0xf]
        %v341 = vld [vmem:[%s278 + $0x8] sm:$0xf]
        %v342 = vld [vmem:[%s278 + $0xc] sm:$0xf]
        %v343 = vld [vmem:[%s278 + $0x10] sm:$0xf]
        %v344 = vld [vmem:[%s278 + $0x14] sm:$0xf]
        %v345 = vld [vmem:[%s278 + $0x18] sm:$0xf]
        %v346 = vld [vmem:[%s278 + $0x1c] sm:$0xf]
        %v347 = vld [vmem:[%s278 + $0x20] sm:$0xf]
        %v348 = vld [vmem:[%s278 + $0x24] sm:$0xf]
        %v349 = vld [vmem:[%s278 + $0x28] sm:$0xf]
        %v350 = vld [vmem:[%s278 + $0x2c] sm:$0xf]
        %v351 = vld [vmem:[%s278 + $0x30] sm:$0xf]
        %v352 = vld [vmem:[%s278 + $0x34] sm:$0xf]
        %v353 = vld [vmem:[%s278 + $0x38] sm:$0xf]
        %v354 = vld [vmem:[%s278 + $0x3c] sm:$0xf]
        %v371 = vunpack.c.l.b16 %v323
        %v372 = vunpack.c.l.b16 %v324
        %v373 = vunpack.c.l.b16 %v325
        %v374 = vunpack.c.l.b16 %v326
        %v375 = vunpack.c.l.b16 %v327
        %v376 = vunpack.c.l.b16 %v328
        %v377 = vunpack.c.l.b16 %v329
        %v378 = vunpack.c.l.b16 %v330
        %v379 = vunpack.c.l.b16 %v331
        %v380 = vunpack.c.l.b16 %v332
        %v381 = vunpack.c.l.b16 %v333
        %v382 = vunpack.c.l.b16 %v334
        %v383 = vunpack.c.l.b16 %v335
        %v384 = vunpack.c.l.b16 %v336
        %v385 = vunpack.c.l.b16 %v337
        %v386 = vunpack.c.l.b16 %v338
        %v387 = vpack.c.b16 %v372, %v371
        %v388 = vpack.c.b16 %v374, %v373
        %v389 = vpack.c.b16 %v376, %v375
        %v390 = vpack.c.b16 %v378, %v377
        %v391 = vpack.c.b16 %v380, %v379
        %v392 = vpack.c.b16 %v382, %v381
        %v393 = vpack.c.b16 %v384, %v383
        %v394 = vpack.c.b16 %v386, %v385
        %403 = vxpose.xlu0.c.b16.start [1/8] %v387, 128
        %404 = vxpose.xlu0.c.b16.cont [2/8] %v388, 128
        %405 = vxpose.xlu0.c.b16.cont [3/8] %v389, 128
        %406 = vxpose.xlu0.c.b16.cont [4/8] %v390, 128
        %407 = vxpose.xlu0.c.b16.cont [5/8] %v391, 128
        %408 = vxpose.xlu0.c.b16.cont [6/8] %v392, 128
        %409 = vxpose.xlu0.c.b16.cont [7/8] %v393, 128
        %410 = vxpose.xlu0.c.b16.end [8/8] %v394, 128
        %v411 = vpop.trf.xlu0
        %v412 = vpop.trf.xlu0
        %v413 = vpop.trf.xlu0
        %v414 = vpop.trf.xlu0
        %v415 = vpop.trf.xlu0
        %v416 = vpop.trf.xlu0
        %v417 = vpop.trf.xlu0
        %v418 = vpop.trf.xlu0
        %v435 = vunpack.c.l.b16 %v339
        %v436 = vunpack.c.l.b16 %v340
        %v437 = vunpack.c.l.b16 %v341
        %v438 = vunpack.c.l.b16 %v342
        %v439 = vunpack.c.l.b16 %v343
        %v440 = vunpack.c.l.b16 %v344
        %v441 = vunpack.c.l.b16 %v345
        %v442 = vunpack.c.l.b16 %v346
        %v443 = vunpack.c.l.b16 %v347
        %v444 = vunpack.c.l.b16 %v348
        %v445 = vunpack.c.l.b16 %v349
        %v446 = vunpack.c.l.b16 %v350
        %v447 = vunpack.c.l.b16 %v351
        %v448 = vunpack.c.l.b16 %v352
        %v449 = vunpack.c.l.b16 %v353
        %v450 = vunpack.c.l.b16 %v354
        %v451 = vpack.c.b16 %v436, %v435
        %v452 = vpack.c.b16 %v438, %v437
        %v453 = vpack.c.b16 %v440, %v439
        %v454 = vpack.c.b16 %v442, %v441
        %v455 = vpack.c.b16 %v444, %v443
        %v456 = vpack.c.b16 %v446, %v445
        %v457 = vpack.c.b16 %v448, %v447
        %v458 = vpack.c.b16 %v450, %v449
        %467 = vmatprep.subr.bf16.mxu0 0
        %468 = vmatpush1.bf16.msra.mxu0 %v451
        %469 = vmatprep.subr.bf16.mxu0 0
        %470 = vmatpush1.bf16.msra.mxu0 %v452
        %471 = vmatprep.subr.bf16.mxu0 0
        %472 = vmatpush1.bf16.msra.mxu0 %v453
        %473 = vmatprep.subr.bf16.mxu0 0
        %474 = vmatpush1.bf16.msra.mxu0 %v454
        %475 = vmatprep.subr.bf16.mxu0 0
        %476 = vmatpush1.bf16.msra.mxu0 %v455
        %477 = vmatprep.subr.bf16.mxu0 0
        %478 = vmatpush1.bf16.msra.mxu0 %v456
        %479 = vmatprep.subr.bf16.mxu0 0
        %480 = vmatpush1.bf16.msra.mxu0 %v457
        %481 = vmatprep.subr.bf16.mxu0 0
        %482 = vmatpush1.bf16.msra.mxu0 %v458
        %483 = vmatprep.subr.bf16.mxu0 0
        %484 = vmatpush1.bf16.msra.mxu0 0
        %485 = vmatprep.subr.bf16.mxu0 0
        %486 = vmatpush1.bf16.msra.mxu0 0
        %487 = vmatprep.subr.bf16.mxu0 0
        %488 = vmatpush1.bf16.msra.mxu0 0
        %489 = vmatprep.subr.bf16.mxu0 0
        %490 = vmatpush1.bf16.msra.mxu0 0
        %491 = vmatprep.subr.bf16.mxu0 0
        %492 = vmatpush1.bf16.msra.mxu0 0
        %493 = vmatprep.subr.bf16.mxu0 0
        %494 = vmatpush1.bf16.msra.mxu0 0
        %495 = vmatprep.subr.bf16.mxu0 0
        %496 = vmatpush1.bf16.msra.mxu0 0
        %497 = vmatprep.subr.bf16.mxu0 0
        %498 = vmatpush1.bf16.msra.mxu0 0
        %499 = vmatprep.mubr.bf16.mxu0 0
        %500 = vmatmul.mubr.bf16.gmra.mrb[0].mxu0 %v411
        %v501 = vpop.f32.mrb[0].mxu0
        %v502 = vadd.f32 0.0, %v501
        %v503 = vpop.f32.mrb[0].mxu0
        %v504 = vpop.f32.mrb[0].mxu0
        %v505 = vadd.f32 0.0, %v504
        %v506 = vpop.f32.mrb[0].mxu0
        %507 = vmatprep.mubr.bf16.mxu0 0
        %508 = vmatmul.mubr.bf16.gmra.mrb[0].mxu0 %v412
        %v509 = vpop.f32.mrb[0].mxu0
        %v510 = vadd.f32 0.0, %v509
        %v511 = vpop.f32.mrb[0].mxu0
        %v512 = vpop.f32.mrb[0].mxu0
        %v513 = vadd.f32 0.0, %v512
        %v514 = vpop.f32.mrb[0].mxu0
        %515 = vmatprep.mubr.bf16.mxu0 0
        %516 = vmatmul.mubr.bf16.gmra.mrb[0].mxu0 %v413
        %v517 = vpop.f32.mrb[0].mxu0
        %v518 = vadd.f32 0.0, %v517
        %v519 = vpop.f32.mrb[0].mxu0
        %v520 = vpop.f32.mrb[0].mxu0
        %v521 = vadd.f32 0.0, %v520
        %v522 = vpop.f32.mrb[0].mxu0
        %523 = vmatprep.mubr.bf16.mxu0 0
        %524 = vmatmul.mubr.bf16.gmra.mrb[0].mxu0 %v414
        %v525 = vpop.f32.mrb[0].mxu0
        %v526 = vadd.f32 0.0, %v525
        %v527 = vpop.f32.mrb[0].mxu0
        %v528 = vpop.f32.mrb[0].mxu0
        %v529 = vadd.f32 0.0, %v528
        %v530 = vpop.f32.mrb[0].mxu0
        %531 = vmatprep.mubr.bf16.mxu0 0
        %532 = vmatmul.mubr.bf16.gmra.mrb[0].mxu0 %v415
        %v533 = vpop.f32.mrb[0].mxu0
        %v534 = vadd.f32 0.0, %v533
        %v535 = vpop.f32.mrb[0].mxu0
        %v536 = vpop.f32.mrb[0].mxu0
        %v537 = vadd.f32 0.0, %v536
        %v538 = vpop.f32.mrb[0].mxu0
        %539 = vmatprep.mubr.bf16.mxu0 0
        %540 = vmatmul.mubr.bf16.gmra.mrb[0].mxu0 %v416
        %v541 = vpop.f32.mrb[0].mxu0
        %v542 = vadd.f32 0.0, %v541
        %v543 = vpop.f32.mrb[0].mxu0
        %v544 = vpop.f32.mrb[0].mxu0
        %v545 = vadd.f32 0.0, %v544
        %v546 = vpop.f32.mrb[0].mxu0
        %547 = vmatprep.mubr.bf16.mxu0 0
        %548 = vmatmul.mubr.bf16.gmra.mrb[0].mxu0 %v417
        %v549 = vpop.f32.mrb[0].mxu0
        %v550 = vadd.f32 0.0, %v549
        %v551 = vpop.f32.mrb[0].mxu0
        %v552 = vpop.f32.mrb[0].mxu0
        %v553 = vadd.f32 0.0, %v552
        %v554 = vpop.f32.mrb[0].mxu0
        %555 = vmatprep.mubr.bf16.mxu0 0
        %556 = vmatmul.mubr.bf16.gmra.mrb[0].mxu0 %v418
        %v557 = vpop.f32.mrb[0].mxu0
        %v558 = vadd.f32 0.0, %v557
        %v559 = vpop.f32.mrb[0].mxu0
        %v560 = vpop.f32.mrb[0].mxu0
        %v561 = vadd.f32 0.0, %v560
        %v562 = vpop.f32.mrb[0].mxu0
        %563 = vdwg.mxu0
        %v564 = vadd.f32 %v307, %v502
        %v565 = vadd.f32 %v308, %v505
        %v566 = vadd.f32 %v309, %v510
        %v567 = vadd.f32 %v310, %v513
        %v568 = vadd.f32 %v311, %v518
        %v569 = vadd.f32 %v312, %v521
        %v570 = vadd.f32 %v313, %v526
        %v571 = vadd.f32 %v314, %v529
        %v572 = vadd.f32 %v315, %v534
        %v573 = vadd.f32 %v316, %v537
        %v574 = vadd.f32 %v317, %v542
        %v575 = vadd.f32 %v318, %v545
        %v576 = vadd.f32 %v319, %v550
        %v577 = vadd.f32 %v320, %v553
        %v578 = vadd.f32 %v321, %v558
        %v579 = vadd.f32 %v322, %v561
        %580 = vst [vmem:[#allocation2] sm:$0xff] %v564
        %581 = vst [vmem:[#allocation2 + $0x8] sm:$0xff] %v565
        %582 = vst [vmem:[#allocation2 + $0x10] sm:$0xff] %v566
        %583 = vst [vmem:[#allocation2 + $0x18] sm:$0xff] %v567
        %584 = vst [vmem:[#allocation2 + $0x20] sm:$0xff] %v568
        %585 = vst [vmem:[#allocation2 + $0x28] sm:$0xff] %v569
        %586 = vst [vmem:[#allocation2 + $0x30] sm:$0xff] %v570
        %587 = vst [vmem:[#allocation2 + $0x38] sm:$0xff] %v571
        %588 = vst [vmem:[#allocation2 + $0x40] sm:$0xff] %v572
        %589 = vst [vmem:[#allocation2 + $0x48] sm:$0xff] %v573
        %590 = vst [vmem:[#allocation2 + $0x50] sm:$0xff] %v574
        %591 = vst [vmem:[#allocation2 + $0x58] sm:$0xff] %v575
        %592 = vst [vmem:[#allocation2 + $0x60] sm:$0xff] %v576
        %593 = vst [vmem:[#allocation2 + $0x68] sm:$0xff] %v577
        %594 = vst [vmem:[#allocation2 + $0x70] sm:$0xff] %v578
        %595 = vst [vmem:[#allocation2 + $0x78] sm:$0xff] %v579
        %p596 = scmp.eq.s32.totalorder %s18, 2
        // Predicated region
        $region74: #{equiv_set_gnn_forward.4} parent=64 // pred_check
          %p597 = pneg %p596
        $region75: #{equiv_set_gnn_forward.4} parent=64 // pred_check_branch
          %599 = sbr.rel (%p597) target = $region77
        $region76: #{equiv_set_gnn_forward.4} parent=64 // pred_region
          %v600 = vld [vmem:[#allocation2] sm:$0xff]
          %v601 = vld [vmem:[#allocation2 + $0x8] sm:$0xff]
          %v602 = vld [vmem:[#allocation2 + $0x10] sm:$0xff]
          %v603 = vld [vmem:[#allocation2 + $0x18] sm:$0xff]
          %v604 = vld [vmem:[#allocation2 + $0x20] sm:$0xff]
          %v605 = vld [vmem:[#allocation2 + $0x28] sm:$0xff]
          %v606 = vld [vmem:[#allocation2 + $0x30] sm:$0xff]
          %v607 = vld [vmem:[#allocation2 + $0x38] sm:$0xff]
          %v608 = vld [vmem:[#allocation2 + $0x40] sm:$0xff]
          %v609 = vld [vmem:[#allocation2 + $0x48] sm:$0xff]
          %v610 = vld [vmem:[#allocation2 + $0x50] sm:$0xff]
          %v611 = vld [vmem:[#allocation2 + $0x58] sm:$0xff]
          %v612 = vld [vmem:[#allocation2 + $0x60] sm:$0xff]
          %v613 = vld [vmem:[#allocation2 + $0x68] sm:$0xff]
          %v614 = vld [vmem:[#allocation2 + $0x70] sm:$0xff]
          %v615 = vld [vmem:[#allocation2 + $0x78] sm:$0xff]
          %v616 = vpack.c.bf16 %v601, %v600
          %v617 = vpack.c.bf16 %v603, %v602
          %v618 = vpack.c.bf16 %v605, %v604
          %v619 = vpack.c.bf16 %v607, %v606
          %v620 = vpack.c.bf16 %v609, %v608
          %v621 = vpack.c.bf16 %v611, %v610
          %v622 = vpack.c.bf16 %v613, %v612
          %v623 = vpack.c.bf16 %v615, %v614
          %v632 = vunpack.c.l.b16 %v616
          %v633 = vunpack.c.h.b16 %v616
          %v634 = vunpack.c.l.b16 %v617
          %v635 = vunpack.c.h.b16 %v617
          %v636 = vunpack.c.l.b16 %v618
          %v637 = vunpack.c.h.b16 %v618
          %v638 = vunpack.c.l.b16 %v619
          %v639 = vunpack.c.h.b16 %v619
          %v640 = vunpack.c.l.b16 %v620
          %v641 = vunpack.c.h.b16 %v620
          %v642 = vunpack.c.l.b16 %v621
          %v643 = vunpack.c.h.b16 %v621
          %v644 = vunpack.c.l.b16 %v622
          %v645 = vunpack.c.h.b16 %v622
          %v646 = vunpack.c.l.b16 %v623
          %v647 = vunpack.c.h.b16 %v623
          %v648 = vpack.c.b16 %v632, %v632
          %v649 = vpack.c.b16 %v633, %v633
          %v650 = vpack.c.b16 %v634, %v634
          %v651 = vpack.c.b16 %v635, %v635
          %v652 = vpack.c.b16 %v636, %v636
          %v653 = vpack.c.b16 %v637, %v637
          %v654 = vpack.c.b16 %v638, %v638
          %v655 = vpack.c.b16 %v639, %v639
          %v656 = vpack.c.b16 %v640, %v640
          %v657 = vpack.c.b16 %v641, %v641
          %v658 = vpack.c.b16 %v642, %v642
          %v659 = vpack.c.b16 %v643, %v643
          %v660 = vpack.c.b16 %v644, %v644
          %v661 = vpack.c.b16 %v645, %v645
          %v662 = vpack.c.b16 %v646, %v646
          %v663 = vpack.c.b16 %v647, %v647
          %680 = vst [vmem:[%s284] sm:$0xf] %v648
          %681 = vst [vmem:[%s284 + $0x4] sm:$0xf] %v649
          %682 = vst [vmem:[%s284 + $0x8] sm:$0xf] %v650
          %683 = vst [vmem:[%s284 + $0xc] sm:$0xf] %v651
          %684 = vst [vmem:[%s284 + $0x10] sm:$0xf] %v652
          %685 = vst [vmem:[%s284 + $0x14] sm:$0xf] %v653
          %686 = vst [vmem:[%s284 + $0x18] sm:$0xf] %v654
          %687 = vst [vmem:[%s284 + $0x1c] sm:$0xf] %v655
          %688 = vst [vmem:[%s284 + $0x20] sm:$0xf] %v656
          %689 = vst [vmem:[%s284 + $0x24] sm:$0xf] %v657
          %690 = vst [vmem:[%s284 + $0x28] sm:$0xf] %v658
          %691 = vst [vmem:[%s284 + $0x2c] sm:$0xf] %v659
          %692 = vst [vmem:[%s284 + $0x30] sm:$0xf] %v660
          %693 = vst [vmem:[%s284 + $0x34] sm:$0xf] %v661
          %694 = vst [vmem:[%s284 + $0x38] sm:$0xf] %v662
          %695 = vst [vmem:[%s284 + $0x3c] sm:$0xf] %v663
        $region77: #{equiv_set_gnn_forward.4} parent=64 // pred_fallthru
          _
        %s696 = smul.u32 16, %s17
        %p697 = scmp.lt.s32.totalorder %s696, 31
        %s698 = scalar_select %p697, %s696, 31
        %s699 = smul.addr %s698, 4
        %s700 = scalar_lea.vmem %s2, %s699
        // Predicated region
        $region78: #{equiv_set_gnn_forward.4} parent=64 // pred_check
          %p701 = pneg %p97
        $region79: #{equiv_set_gnn_forward.4} parent=64 // pred_check_branch
          %703 = sbr.rel (%p701) target = $region81
        $region80: #{equiv_set_gnn_forward.4} parent=64 // pred_region
          %s704 = smul.u32 16, %s17
        $region81: #{equiv_set_gnn_forward.4} parent=64 // pred_fallthru
          _
      $region65: #{equiv_set_gnn_forward.4} parent=5 // pred_fallthru
        _
      %p705 = scmp.le.s32.totalorder 2, %s8
      // Predicated region
      $region82: #{equiv_set_gnn_forward.4} parent=5 // pred_check
        %p706 = pneg %p705
      $region83: #{equiv_set_gnn_forward.4} parent=5 // pred_check_branch
        %708 = sbr.rel (%p706) target = $region85
      $region84: #{equiv_set_gnn_forward.4} parent=5 // pred_region
        %s709 = ssub.s32 %s8, 2
        // Predicated region
        $region86: #{equiv_set_gnn_forward.4} parent=84 // pred_check
          %p710 = pneg %p103
        $region87: #{equiv_set_gnn_forward.4} parent=84 // pred_check_branch
          %712 = sbr.rel (%p710) target = $region89
        $region88: #{equiv_set_gnn_forward.4} parent=84 // pred_region
          %s713 = smul.u32 16, %s19
          %p714 = scmp.lt.s32.totalorder %s713, 31
          %s715 = scalar_select %p714, %s713, 31
          %s716 = smul.addr %s715, 4
          %s717 = scalar_lea.vmem %s2, %s716
        $region89: #{equiv_set_gnn_forward.4} parent=84 // pred_fallthru
          _
      $region85: #{equiv_set_gnn_forward.4} parent=5 // pred_fallthru
        _
    $region6: #{equiv_set_gnn_forward.4} parent=1 // loop_footer
      %s12 = sadd.s32 1, %s8
    $region7: #{equiv_set_gnn_forward.4} parent=1 // loop_footer_branch
      %7 = sbr.rel target = $region3
    $region8: #{equiv_set_gnn_forward.4} parent=1 // loop_exit
      _

// kernel: equiv_set_gnn_forward.5
$region0: #{equiv_set_gnn_forward.5}
  #allocation0 [shape = 'u32[]', space=smem, size = 0x4, offset = 0x4, fixed_abs, tag = 'smem constant byte address 0x4 - core index']
  #allocation1 [shape = 'u32[144,128]{1,0:T(1,128)}', space=vmem, size = 0x12000, scoped, tag = 'internal scratch']
  #allocation2 [shape = 'f32[128,128]{1,0:T(8,128)}', space=vmem, size = 0x10000, scoped, tag = 'scratch operand']
  %s0 = inlined_call_operand.vmem [shape: bf16[384,256], index: 0, kind: input, shape index: {}]
  %s1 = inlined_call_operand.vmem [shape: bf16[256,128], index: 1, kind: input, shape index: {}]
  %s2 = inlined_call_operand.vmem [shape: f32[384,128], index: 2, kind: input, shape index: {}]
  %s3 = inlined_call_operand.vmem [shape: f32[128,128], index: 3, kind: input, shape index: {}]
  %s4 = inlined_call_operand.vmem [shape: f32[1,128], index: 4, kind: input, shape index: {}]
  %s5 = inlined_call_operand.vmem [shape: f32[128,128], index: 5, kind: input, shape index: {}]
  %s6 = inlined_call_operand.vmem [shape: f32[1,128], index: 6, kind: input, shape index: {}]
  %s7 = inlined_call_operand.vmem [shape: f32[384,128], index: 7, kind: output, shape index: {}]
  %s8 = sld [smem:[#allocation0]]
  $region110: #{equiv_set_gnn_forward.5} parent=0
    _
  %s10 = ssub.s32 1, %s8
  %s11 = scalar_select 0, %s10, %s8
  $region1: #{equiv_set_gnn_forward.5} parent=0
    #allocation3 [shape = 'u8[65536]{0}', space=vmem, size = 0x10000, scoped, tag = 'input window, operand 0']
    loop: start=0, step=1, limit=8
    $region2: #{equiv_set_gnn_forward.5} parent=1 // loop_pre_header
      _
    $region3: #{equiv_set_gnn_forward.5} parent=1 // loop_header
      %s13 = sphi 0, %s17
      %p14 = scmp.ge.s32.totalorder %s13, 8
      %s20 = sphi 0, %s32
      %s21 = sphi 0, %s28
      %s22 = sphi 0, %s20
      %s23 = sphi 0, %s21
      %s24 = sphi 0, %s22
      %s25 = sphi 0, %s23
      %s37 = sphi 0, %s39
      %s40 = sphi 0, %s37
      %s41 = sphi 0, %s40
      %s57 = sphi 0, %s41
      %s63 = sphi 0, %s65
      %s66 = sphi 0, %s63
      %s67 = sphi 0, %s66
      %s83 = sphi 0, %s67
      %s89 = sphi 0, %s91
      %s92 = sphi 0, %s89
      %s93 = sphi 0, %s92
      %s109 = sphi 0, %s93
      %s113 = sphi 0, %s113
      %s115 = sphi 0, %s113
      %s116 = sphi 0, %s115
      %s130 = sphi 0, %s116
      %s134 = sphi 0, %s134
      %s136 = sphi 0, %s134
      %s137 = sphi 0, %s136
      %s151 = sphi 0, %s137
      %s155 = sphi 0, %s155
      %s157 = sphi 0, %s155
      %s158 = sphi 0, %s157
      %s172 = sphi 0, %s158
      %s176 = sphi 0, %s176
      %s178 = sphi 0, %s176
      %s179 = sphi 0, %s178
      %s193 = sphi 0, %s179
      %s199 = sphi 0, %s201
      %s202 = sphi 0, %s199
      %s203 = sphi 0, %s202
      %s219 = sphi 0, %s203
    $region4: #{equiv_set_gnn_forward.5} parent=1 // loop_header_branch
      %16 = sbr.rel (%p14) target = $region8
    $region5: #{equiv_set_gnn_forward.5} parent=1 // loop_body
      %s18 = ssub.s32 %s13, 1
      %s19 = ssub.s32 %s13, 2
      %s26 = sadd.s32 1, %s21
      %p27 = scmp.ge.s32.totalorder %s26, 2
      %s28 = scalar_select %p27, 0, %s26
      %s29 = sadd.s32 1, %s20
      %s30 = scalar_select %p27, %s29, %s20
      %p31 = scmp.ge.s32.totalorder %s30, 3
      %s32 = scalar_select %p31, 0, %s30
      %s33 = ssub.s32 %s20, %s32
      %s34 = ssub.s32 %s21, %s28
      %s35 = sor.u32 %s33, %s34
      %p36 = scmp.eq.s32.totalorder %s35, 0
      %s38 = sadd.s32 %s37, 1
      %s39 = scalar_select %p36, %s37, %s38
      %p42 = pneg %p36
      %p43 = scmp.eq.s32.totalorder %s13, 5
      %p44 = por %p42, %p43
      %p45 = scmp.ne.s32.totalorder %s37, %s40
      %p46 = scmp.eq.s32.totalorder %s13, 0
      %p47 = por %p45, %p46
      %p48 = scmp.ne.s32.totalorder %s37, %s40
      %p49 = scmp.eq.s32.totalorder %s18, 5
      %p50 = por %p48, %p49
      %p51 = scmp.ne.s32.totalorder %s40, %s41
      %p52 = scmp.eq.s32.totalorder %s18, 0
      %p53 = por %p51, %p52
      %p54 = scmp.ne.s32.totalorder %s40, %s41
      %p55 = scmp.eq.s32.totalorder %s19, 5
      %p56 = por %p54, %p55
      %p58 = scmp.ne.s32.totalorder %s41, %s57
      %p59 = scmp.eq.s32.totalorder %s19, 0
      %p60 = por %p58, %p59
      %s61 = ssub.s32 %s21, %s28
      %p62 = scmp.eq.s32.totalorder %s61, 0
      %s64 = sadd.s32 %s63, 1
      %s65 = scalar_select %p62, %s63, %s64
      %p68 = pneg %p62
      %p69 = scmp.eq.s32.totalorder %s13, 5
      %p70 = por %p68, %p69
      %p71 = scmp.ne.s32.totalorder %s63, %s66
      %p72 = scmp.eq.s32.totalorder %s13, 0
      %p73 = por %p71, %p72
      %p74 = scmp.ne.s32.totalorder %s63, %s66
      %p75 = scmp.eq.s32.totalorder %s18, 5
      %p76 = por %p74, %p75
      %p77 = scmp.ne.s32.totalorder %s66, %s67
      %p78 = scmp.eq.s32.totalorder %s18, 0
      %p79 = por %p77, %p78
      %p80 = scmp.ne.s32.totalorder %s66, %s67
      %p81 = scmp.eq.s32.totalorder %s19, 5
      %p82 = por %p80, %p81
      %p84 = scmp.ne.s32.totalorder %s67, %s83
      %p85 = scmp.eq.s32.totalorder %s19, 0
      %p86 = por %p84, %p85
      %s87 = ssub.s32 %s20, %s32
      %p88 = scmp.eq.s32.totalorder %s87, 0
      %s90 = sadd.s32 %s89, 1
      %s91 = scalar_select %p88, %s89, %s90
      %p94 = pneg %p88
      %p95 = scmp.eq.s32.totalorder %s13, 5
      %p96 = por %p94, %p95
      %p97 = scmp.ne.s32.totalorder %s89, %s92
      %p98 = scmp.eq.s32.totalorder %s13, 0
      %p99 = por %p97, %p98
      %p100 = scmp.ne.s32.totalorder %s89, %s92
      %p101 = scmp.eq.s32.totalorder %s18, 5
      %p102 = por %p100, %p101
      %p103 = scmp.ne.s32.totalorder %s92, %s93
      %p104 = scmp.eq.s32.totalorder %s18, 0
      %p105 = por %p103, %p104
      %p106 = scmp.ne.s32.totalorder %s92, %s93
      %p107 = scmp.eq.s32.totalorder %s19, 5
      %p108 = por %p106, %p107
      %p110 = scmp.ne.s32.totalorder %s93, %s109
      %p111 = scmp.eq.s32.totalorder %s19, 0
      %p112 = por %p110, %p111
      %s114 = sadd.s32 %s113, 1
      %p117 = scmp.eq.s32.totalorder %s13, 5
      %p118 = scmp.ne.s32.totalorder %s113, %s115
      %p119 = scmp.eq.s32.totalorder %s13, 0
      %p120 = por %p118, %p119
      %p121 = scmp.ne.s32.totalorder %s113, %s115
      %p122 = scmp.eq.s32.totalorder %s18, 5
      %p123 = por %p121, %p122
      %p124 = scmp.ne.s32.totalorder %s115, %s116
      %p125 = scmp.eq.s32.totalorder %s18, 0
      %p126 = por %p124, %p125
      %p127 = scmp.ne.s32.totalorder %s115, %s116
      %p128 = scmp.eq.s32.totalorder %s19, 5
      %p129 = por %p127, %p128
      %p131 = scmp.ne.s32.totalorder %s116, %s130
      %p132 = scmp.eq.s32.totalorder %s19, 0
      %p133 = por %p131, %p132
      %s135 = sadd.s32 %s134, 1
      %p138 = scmp.eq.s32.totalorder %s13, 5
      %p139 = scmp.ne.s32.totalorder %s134, %s136
      %p140 = scmp.eq.s32.totalorder %s13, 0
      %p141 = por %p139, %p140
      %p142 = scmp.ne.s32.totalorder %s134, %s136
      %p143 = scmp.eq.s32.totalorder %s18, 5
      %p144 = por %p142, %p143
      %p145 = scmp.ne.s32.totalorder %s136, %s137
      %p146 = scmp.eq.s32.totalorder %s18, 0
      %p147 = por %p145, %p146
      %p148 = scmp.ne.s32.totalorder %s136, %s137
      %p149 = scmp.eq.s32.totalorder %s19, 5
      %p150 = por %p148, %p149
      %p152 = scmp.ne.s32.totalorder %s137, %s151
      %p153 = scmp.eq.s32.totalorder %s19, 0
      %p154 = por %p152, %p153
      %s156 = sadd.s32 %s155, 1
      %p159 = scmp.eq.s32.totalorder %s13, 5
      %p160 = scmp.ne.s32.totalorder %s155, %s157
      %p161 = scmp.eq.s32.totalorder %s13, 0
      %p162 = por %p160, %p161
      %p163 = scmp.ne.s32.totalorder %s155, %s157
      %p164 = scmp.eq.s32.totalorder %s18, 5
      %p165 = por %p163, %p164
      %p166 = scmp.ne.s32.totalorder %s157, %s158
      %p167 = scmp.eq.s32.totalorder %s18, 0
      %p168 = por %p166, %p167
      %p169 = scmp.ne.s32.totalorder %s157, %s158
      %p170 = scmp.eq.s32.totalorder %s19, 5
      %p171 = por %p169, %p170
      %p173 = scmp.ne.s32.totalorder %s158, %s172
      %p174 = scmp.eq.s32.totalorder %s19, 0
      %p175 = por %p173, %p174
      %s177 = sadd.s32 %s176, 1
      %p180 = scmp.eq.s32.totalorder %s13, 5
      %p181 = scmp.ne.s32.totalorder %s176, %s178
      %p182 = scmp.eq.s32.totalorder %s13, 0
      %p183 = por %p181, %p182
      %p184 = scmp.ne.s32.totalorder %s176, %s178
      %p185 = scmp.eq.s32.totalorder %s18, 5
      %p186 = por %p184, %p185
      %p187 = scmp.ne.s32.totalorder %s178, %s179
      %p188 = scmp.eq.s32.totalorder %s18, 0
      %p189 = por %p187, %p188
      %p190 = scmp.ne.s32.totalorder %s178, %s179
      %p191 = scmp.eq.s32.totalorder %s19, 5
      %p192 = por %p190, %p191
      %p194 = scmp.ne.s32.totalorder %s179, %s193
      %p195 = scmp.eq.s32.totalorder %s19, 0
      %p196 = por %p194, %p195
      %s197 = ssub.s32 %s20, %s32
      %p198 = scmp.eq.s32.totalorder %s197, 0
      %s200 = sadd.s32 %s199, 1
      %s201 = scalar_select %p198, %s199, %s200
      %p204 = pneg %p198
      %p205 = scmp.eq.s32.totalorder %s13, 5
      %p206 = por %p204, %p205
      %p207 = scmp.ne.s32.totalorder %s199, %s202
      %p208 = scmp.eq.s32.totalorder %s13, 0
      %p209 = por %p207, %p208
      %p210 = scmp.ne.s32.totalorder %s199, %s202
      %p211 = scmp.eq.s32.totalorder %s18, 5
      %p212 = por %p210, %p211
      %p213 = scmp.ne.s32.totalorder %s202, %s203
      %p214 = scmp.eq.s32.totalorder %s18, 0
      %p215 = por %p213, %p214
      %p216 = scmp.ne.s32.totalorder %s202, %s203
      %p217 = scmp.eq.s32.totalorder %s19, 5
      %p218 = por %p216, %p217
      %p220 = scmp.ne.s32.totalorder %s203, %s219
      %p221 = scmp.eq.s32.totalorder %s19, 0
      %p222 = por %p220, %p221
      %p223 = scmp.le.s32.totalorder 1, %s13
      %p224 = scmp.lt.s32.totalorder %s13, 7
      %p225 = pnand %p223, %p224
      %p226 = pneg %p225
      // Predicated region
      $region9: #{equiv_set_gnn_forward.5} parent=5 // pred_check
        _
      $region10: #{equiv_set_gnn_forward.5} parent=5 // pred_check_branch
        %228 = sbr.rel (%p225) target = $region12
      $region11: #{equiv_set_gnn_forward.5} parent=5 // pred_region
        %s229 = ssub.s32 %s13, 1
        // Predicated region
        $region13: #{equiv_set_gnn_forward.5} parent=11 // pred_check
          %p230 = pneg %p126
        $region14: #{equiv_set_gnn_forward.5} parent=11 // pred_check_branch
          %232 = sbr.rel (%p230) target = $region16
        $region15: #{equiv_set_gnn_forward.5} parent=11 // pred_region
          _
        $region16: #{equiv_set_gnn_forward.5} parent=11 // pred_fallthru
          _
        // Predicated region
        $region17: #{equiv_set_gnn_forward.5} parent=11 // pred_check
          %p233 = pneg %p147
        $region18: #{equiv_set_gnn_forward.5} parent=11 // pred_check_branch
          %235 = sbr.rel (%p233) target = $region20
        $region19: #{equiv_set_gnn_forward.5} parent=11 // pred_region
          _
        $region20: #{equiv_set_gnn_forward.5} parent=11 // pred_fallthru
          _
        // Predicated region
        $region21: #{equiv_set_gnn_forward.5} parent=11 // pred_check
          %p236 = pneg %p168
        $region22: #{equiv_set_gnn_forward.5} parent=11 // pred_check_branch
          %238 = sbr.rel (%p236) target = $region24
        $region23: #{equiv_set_gnn_forward.5} parent=11 // pred_region
          _
        $region24: #{equiv_set_gnn_forward.5} parent=11 // pred_fallthru
          _
        // Predicated region
        $region25: #{equiv_set_gnn_forward.5} parent=11 // pred_check
          %p239 = pneg %p189
        $region26: #{equiv_set_gnn_forward.5} parent=11 // pred_check_branch
          %241 = sbr.rel (%p239) target = $region28
        $region27: #{equiv_set_gnn_forward.5} parent=11 // pred_region
          _
        $region28: #{equiv_set_gnn_forward.5} parent=11 // pred_fallthru
          _
      $region12: #{equiv_set_gnn_forward.5} parent=5 // pred_fallthru
        _
      %p242 = scmp.lt.s32.totalorder %s13, 6
      // Predicated region
      $region29: #{equiv_set_gnn_forward.5} parent=5 // pred_check
        %p243 = pneg %p242
      $region30: #{equiv_set_gnn_forward.5} parent=5 // pred_check_branch
        %245 = sbr.rel (%p243) target = $region32
      $region31: #{equiv_set_gnn_forward.5} parent=5 // pred_region
        // Predicated region
        $region33: #{equiv_set_gnn_forward.5} parent=31 // pred_check
          %p246 = pneg %p47
        $region34: #{equiv_set_gnn_forward.5} parent=31 // pred_check_branch
          %248 = sbr.rel (%p246) target = $region36
        $region35: #{equiv_set_gnn_forward.5} parent=31 // pred_region
          %s249 = sand.u32 %s37, 1
          %s250 = sand.u32 %s37, 1
          %s251 = smul.addr %s250, 64
          %s252 = scalar_lea.vmem [#allocation3], %s251
          %s253 = smul.u32 16, %s20
          %s254 = smul.addr %s253, 2
          %s255 = sadd.s32 %s21, %s254
          %s256 = smul.addr %s255, 4
          %s257 = scalar_lea.vmem %s0, %s256
          // Predicated region
          $region37: #{equiv_set_gnn_forward.5} parent=35 // pred_check
            _
          $region38: #{equiv_set_gnn_forward.5} parent=35 // pred_check_branch
            %259 = sbr.rel (0) target = $region40
          $region39: #{equiv_set_gnn_forward.5} parent=35 // pred_region
            // Predicated region
            $region41: #{equiv_set_gnn_forward.5} parent=39 // pred_check
              _
            $region42: #{equiv_set_gnn_forward.5} parent=39 // pred_check_branch
              %261 = sbr.rel target = $region44
            $region43: #{equiv_set_gnn_forward.5} parent=39 // pred_region
              // Predicated region
              $region56: #{equiv_set_gnn_forward.5} parent=43 // pred_check
                _
              $region57: #{equiv_set_gnn_forward.5} parent=43 // pred_check_branch
                %306 = sbr.rel (0) target = $region59
              $region58: #{equiv_set_gnn_forward.5} parent=43 // pred_region
                loop: start=0, step=1, limit=1
                $region60: #{equiv_set_gnn_forward.5} parent=58 // loop_pre_header
                  _
                $region61: #{equiv_set_gnn_forward.5} parent=58 // loop_header
                  %s308 = sphi 0, %s312
                  %p309 = scmp.ge.s32.totalorder %s308, 1
                  %s313 = sphi %s257, %s257
                  %s314 = sphi %s252, %s252
                $region62: #{equiv_set_gnn_forward.5} parent=58 // loop_header_branch
                  %311 = sbr.rel (%p309) target = $region66
                $region63: #{equiv_set_gnn_forward.5} parent=58 // loop_body
                  _
                $region64: #{equiv_set_gnn_forward.5} parent=58 // loop_footer
                  %s312 = sadd.s32 1, %s308
                $region65: #{equiv_set_gnn_forward.5} parent=58 // loop_footer_branch
                  %307 = sbr.rel target = $region61
                $region66: #{equiv_set_gnn_forward.5} parent=58 // loop_exit
                  _
                loop: start=0, step=1, limit=1
                $region67: #{equiv_set_gnn_forward.5} parent=58 // loop_pre_header
                  _
                $region68: #{equiv_set_gnn_forward.5} parent=58 // loop_header
                  %s317 = sphi 0, %s321
                  %p318 = scmp.ge.s32.totalorder %s317, 1
                  %s322 = sphi %s257, %s257
                  %s323 = sphi %s252, %s252
                $region69: #{equiv_set_gnn_forward.5} parent=58 // loop_header_branch
                  %320 = sbr.rel (%p318) target = $region73
                $region70: #{equiv_set_gnn_forward.5} parent=58 // loop_body
                  %v324 = vld [vmem:[%s322] sm:$0xf]
                  %325 = vst [vmem:[%s323] sm:$0xf] %v324
                  %v326 = vld [vmem:[%s322 + $0x8] sm:$0xf]
                  %327 = vst [vmem:[%s323 + $0x4] sm:$0xf] %v326
                  %v328 = vld [vmem:[%s322 + $0x10] sm:$0xf]
                  %329 = vst [vmem:[%s323 + $0x8] sm:$0xf] %v328
                  %v330 = vld [vmem:[%s322 + $0x18] sm:$0xf]
                  %331 = vst [vmem:[%s323 + $0xc] sm:$0xf] %v330
                  %v332 = vld [vmem:[%s322 + $0x20] sm:$0xf]
                  %333 = vst [vmem:[%s323 + $0x10] sm:$0xf] %v332
                  %v334 = vld [vmem:[%s322 + $0x28] sm:$0xf]
                  %335 = vst [vmem:[%s323 + $0x14] sm:$0xf] %v334
                  %v336 = vld [vmem:[%s322 + $0x30] sm:$0xf]
                  %337 = vst [vmem:[%s323 + $0x18] sm:$0xf] %v336
                  %v338 = vld [vmem:[%s322 + $0x38] sm:$0xf]
                  %339 = vst [vmem:[%s323 + $0x1c] sm:$0xf] %v338
                  %v340 = vld [vmem:[%s322 + $0x40] sm:$0xf]
                  %341 = vst [vmem:[%s323 + $0x20] sm:$0xf] %v340
                  %v342 = vld [vmem:[%s322 + $0x48] sm:$0xf]
                  %343 = vst [vmem:[%s323 + $0x24] sm:$0xf] %v342
                  %v344 = vld [vmem:[%s322 + $0x50] sm:$0xf]
                  %345 = vst [vmem:[%s323 + $0x28] sm:$0xf] %v344
                  %v346 = vld [vmem:[%s322 + $0x58] sm:$0xf]
                  %347 = vst [vmem:[%s323 + $0x2c] sm:$0xf] %v346
                  %v348 = vld [vmem:[%s322 + $0x60] sm:$0xf]
                  %349 = vst [vmem:[%s323 + $0x30] sm:$0xf] %v348
                  %v350 = vld [vmem:[%s322 + $0x68] sm:$0xf]
                  %351 = vst [vmem:[%s323 + $0x34] sm:$0xf] %v350
                  %v352 = vld [vmem:[%s322 + $0x70] sm:$0xf]
                  %353 = vst [vmem:[%s323 + $0x38] sm:$0xf] %v352
                  %v354 = vld [vmem:[%s322 + $0x78] sm:$0xf]
                  %355 = vst [vmem:[%s323 + $0x3c] sm:$0xf] %v354
                $region71: #{equiv_set_gnn_forward.5} parent=58 // loop_footer
                  %s321 = sadd.s32 1, %s317
                $region72: #{equiv_set_gnn_forward.5} parent=58 // loop_footer_branch
                  %316 = sbr.rel target = $region68
                $region73: #{equiv_set_gnn_forward.5} parent=58 // loop_exit
                  _
              $region59: #{equiv_set_gnn_forward.5} parent=43 // pred_fallthru
                _
            $region44: #{equiv_set_gnn_forward.5} parent=39 // pred_fallthru
              _
            // Predicated region
            $region45: #{equiv_set_gnn_forward.5} parent=39 // pred_check
              _
            $region46: #{equiv_set_gnn_forward.5} parent=39 // pred_check_branch
              %263 = sbr.rel (0) target = $region48
            $region47: #{equiv_set_gnn_forward.5} parent=39 // pred_region
              loop: start=0, step=1, limit=1
              $region49: #{equiv_set_gnn_forward.5} parent=47 // loop_pre_header
                _
              $region50: #{equiv_set_gnn_forward.5} parent=47 // loop_header
                %s266 = sphi 0, %s270
                %p267 = scmp.ge.s32.totalorder %s266, 1
                %s271 = sphi %s257, %s257
                %s272 = sphi %s252, %s252
              $region51: #{equiv_set_gnn_forward.5} parent=47 // loop_header_branch
                %269 = sbr.rel (%p267) target = $region55
              $region52: #{equiv_set_gnn_forward.5} parent=47 // loop_body
                %v273 = vld [vmem:[%s271] sm:$0xf]
                %274 = vst [vmem:[%s272] sm:$0xf] %v273
                %v275 = vld [vmem:[%s271 + $0x8] sm:$0xf]
                %276 = vst [vmem:[%s272 + $0x4] sm:$0xf] %v275
                %v277 = vld [vmem:[%s271 + $0x10] sm:$0xf]
                %278 = vst [vmem:[%s272 + $0x8] sm:$0xf] %v277
                %v279 = vld [vmem:[%s271 + $0x18] sm:$0xf]
                %280 = vst [vmem:[%s272 + $0xc] sm:$0xf] %v279
                %v281 = vld [vmem:[%s271 + $0x20] sm:$0xf]
                %282 = vst [vmem:[%s272 + $0x10] sm:$0xf] %v281
                %v283 = vld [vmem:[%s271 + $0x28] sm:$0xf]
                %284 = vst [vmem:[%s272 + $0x14] sm:$0xf] %v283
                %v285 = vld [vmem:[%s271 + $0x30] sm:$0xf]
                %286 = vst [vmem:[%s272 + $0x18] sm:$0xf] %v285
                %v287 = vld [vmem:[%s271 + $0x38] sm:$0xf]
                %288 = vst [vmem:[%s272 + $0x1c] sm:$0xf] %v287
                %v289 = vld [vmem:[%s271 + $0x40] sm:$0xf]
                %290 = vst [vmem:[%s272 + $0x20] sm:$0xf] %v289
                %v291 = vld [vmem:[%s271 + $0x48] sm:$0xf]
                %292 = vst [vmem:[%s272 + $0x24] sm:$0xf] %v291
                %v293 = vld [vmem:[%s271 + $0x50] sm:$0xf]
                %294 = vst [vmem:[%s272 + $0x28] sm:$0xf] %v293
                %v295 = vld [vmem:[%s271 + $0x58] sm:$0xf]
                %296 = vst [vmem:[%s272 + $0x2c] sm:$0xf] %v295
                %v297 = vld [vmem:[%s271 + $0x60] sm:$0xf]
                %298 = vst [vmem:[%s272 + $0x30] sm:$0xf] %v297
                %v299 = vld [vmem:[%s271 + $0x68] sm:$0xf]
                %300 = vst [vmem:[%s272 + $0x34] sm:$0xf] %v299
                %v301 = vld [vmem:[%s271 + $0x70] sm:$0xf]
                %302 = vst [vmem:[%s272 + $0x38] sm:$0xf] %v301
                %v303 = vld [vmem:[%s271 + $0x78] sm:$0xf]
                %304 = vst [vmem:[%s272 + $0x3c] sm:$0xf] %v303
              $region53: #{equiv_set_gnn_forward.5} parent=47 // loop_footer
                %s270 = sadd.s32 1, %s266
              $region54: #{equiv_set_gnn_forward.5} parent=47 // loop_footer_branch
                %265 = sbr.rel target = $region50
              $region55: #{equiv_set_gnn_forward.5} parent=47 // loop_exit
                _
            $region48: #{equiv_set_gnn_forward.5} parent=39 // pred_fallthru
              _
          $region40: #{equiv_set_gnn_forward.5} parent=35 // pred_fallthru
            _
          %356 = vnop
        $region36: #{equiv_set_gnn_forward.5} parent=31 // pred_fallthru
          _
        // Predicated region
        $region74: #{equiv_set_gnn_forward.5} parent=31 // pred_check
          %p357 = pneg %p73
        $region75: #{equiv_set_gnn_forward.5} parent=31 // pred_check_branch
          %359 = sbr.rel (%p357) target = $region77
        $region76: #{equiv_set_gnn_forward.5} parent=31 // pred_region
          %s360 = smul.u32 16, %s21
          %p361 = scmp.lt.s32.totalorder %s360, 31
          %s362 = scalar_select %p361, %s360, 31
          %s363 = smul.addr %s362, 4
          %s364 = scalar_lea.vmem %s1, %s363
          %s365 = smul.u32 16, %s21
        $region77: #{equiv_set_gnn_forward.5} parent=31 // pred_fallthru
          _
        // Predicated region
        $region78: #{equiv_set_gnn_forward.5} parent=31 // pred_check
          %p366 = pneg %p99
        $region79: #{equiv_set_gnn_forward.5} parent=31 // pred_check_branch
          %368 = sbr.rel (%p366) target = $region81
        $region80: #{equiv_set_gnn_forward.5} parent=31 // pred_region
          %s369 = smul.u32 16, %s20
          %p370 = scmp.lt.s32.totalorder %s369, 47
          %s371 = scalar_select %p370, %s369, 47
          %s372 = smul.addr %s371, 8
          %s373 = scalar_lea.vmem %s2, %s372
          %s374 = smul.u32 16, %s20
        $region81: #{equiv_set_gnn_forward.5} parent=31 // pred_fallthru
          _
      $region32: #{equiv_set_gnn_forward.5} parent=5 // pred_fallthru
        _
      %p375 = scmp.le.s32.totalorder 1, %s13
      %p376 = scmp.lt.s32.totalorder %s13, 7
      %p377 = pnand %p375, %p376
      %p378 = pneg %p377
      // Predicated region
      $region82: #{equiv_set_gnn_forward.5} parent=5 // pred_check
        _
      $region83: #{equiv_set_gnn_forward.5} parent=5 // pred_check_branch
        %380 = sbr.rel (%p377) target = $region85
      $region84: #{equiv_set_gnn_forward.5} parent=5 // pred_region
        %s381 = ssub.s32 %s13, 1
        %s382 = sand.u32 %s40, 1
        %s383 = sand.u32 %s40, 1
        %s384 = smul.addr %s383, 64
        %s385 = scalar_lea.vmem [#allocation3], %s384
        // Predicated region
        $region86: #{equiv_set_gnn_forward.5} parent=84 // pred_check
          %p386 = pneg %p53
        $region87: #{equiv_set_gnn_forward.5} parent=84 // pred_check_branch
          %388 = sbr.rel (%p386) target = $region89
        $region88: #{equiv_set_gnn_forward.5} parent=84 // pred_region
          _
        $region89: #{equiv_set_gnn_forward.5} parent=84 // pred_fallthru
          _
        %s389 = sand.u32 %s40, 1
        %s390 = sand.u32 %s40, 1
        %s391 = smul.addr %s390, 64
        %s392 = scalar_lea.vmem [#allocation3], %s391
        %p393 = pneg %p53
        %p394 = pneg %p50
        %s395 = smul.u32 16, %s23
        %p396 = scmp.lt.s32.totalorder %s395, 31
        %s397 = scalar_select %p396, %s395, 31
        %s398 = smul.addr %s397, 4
        %s399 = scalar_lea.vmem %s1, %s398
        %p400 = pneg %p79
        %p401 = pneg %p76
        %s402 = smul.u32 16, %s22
        %p403 = scmp.lt.s32.totalorder %s402, 47
        %s404 = scalar_select %p403, %s402, 47
        %s405 = smul.addr %s404, 8
        %s406 = scalar_lea.vmem %s2, %s405
        %p407 = pneg %p105
        %p408 = pneg %p102
        %p409 = pneg %p126
        %p410 = pneg %p123
        %p411 = pneg %p147
        %p412 = pneg %p144
        %p413 = pneg %p168
        %p414 = pneg %p165
        %p415 = pneg %p189
        %p416 = pneg %p186
        %p417 = pneg %p215
        %p418 = pneg %p212
        %s419 = smul.u32 16, %s22
        %p420 = scmp.lt.s32.totalorder %s419, 47
        %s421 = scalar_select %p420, %s419, 47
        %s422 = smul.addr %s421, 8
        %s423 = scalar_lea.vmem %s7, %s422
        %s424 = smul.u32 16, %s22
        %s425 = smul.u32 16, %s23
        %p426 = scmp.lt.s32.totalorder %s425, 31
        %s427 = scalar_select %p426, %s425, 31
        %s428 = smul.addr %s427, 4
        %s429 = scalar_lea.vmem %s1, %s428
        %s430 = smul.u32 16, %s23
        %s431 = smul.u32 16, %s22
        %p432 = scmp.lt.s32.totalorder %s431, 47
        %s433 = scalar_select %p432, %s431, 47
        %s434 = smul.addr %s433, 8
        %s435 = scalar_lea.vmem %s2, %s434
        %s436 = smul.u32 16, %s22
        %s437 = smul.u32 16, %s22
        %p438 = scmp.lt.s32.totalorder %s437, 47
        %s439 = scalar_select %p438, %s437, 47
        %s440 = smul.addr %s439, 8
        %s441 = scalar_lea.vmem %s7, %s440
        %s442 = smul.u32 16, %s22
        %p444 = scmp.eq.s32.totalorder %s23, 0
        // Predicated region
        $region90: #{equiv_set_gnn_forward.5} parent=84 // pred_check
          %p445 = pneg %p444
        $region91: #{equiv_set_gnn_forward.5} parent=84 // pred_check_branch
          %447 = sbr.rel (%p445) target = $region93
        $region92: #{equiv_set_gnn_forward.5} parent=84 // pred_region
          %448 = vst [vmem:[#allocation2] sm:$0xff] 0.0
          %449 = vst [vmem:[#allocation2 + $0x8] sm:$0xff] 0.0
          %450 = vst [vmem:[#allocation2 + $0x10] sm:$0xff] 0.0
          %451 = vst [vmem:[#allocation2 + $0x18] sm:$0xff] 0.0
          %452 = vst [vmem:[#allocation2 + $0x20] sm:$0xff] 0.0
          %453 = vst [vmem:[#allocation2 + $0x28] sm:$0xff] 0.0
          %454 = vst [vmem:[#allocation2 + $0x30] sm:$0xff] 0.0
          %455 = vst [vmem:[#allocation2 + $0x38] sm:$0xff] 0.0
          %456 = vst [vmem:[#allocation2 + $0x40] sm:$0xff] 0.0
          %457 = vst [vmem:[#allocation2 + $0x48] sm:$0xff] 0.0
          %458 = vst [vmem:[#allocation2 + $0x50] sm:$0xff] 0.0
          %459 = vst [vmem:[#allocation2 + $0x58] sm:$0xff] 0.0
          %460 = vst [vmem:[#allocation2 + $0x60] sm:$0xff] 0.0
          %461 = vst [vmem:[#allocation2 + $0x68] sm:$0xff] 0.0
          %462 = vst [vmem:[#allocation2 + $0x70] sm:$0xff] 0.0
          %463 = vst [vmem:[#allocation2 + $0x78] sm:$0xff] 0.0
        $region93: #{equiv_set_gnn_forward.5} parent=84 // pred_fallthru
          _
        %v464 = vld [vmem:[#allocation2] sm:$0xff]
        %v465 = vld [vmem:[#allocation2 + $0x8] sm:$0xff]
        %v466 = vld [vmem:[#allocation2 + $0x10] sm:$0xff]
        %v467 = vld [vmem:[#allocation2 + $0x18] sm:$0xff]
        %v468 = vld [vmem:[#allocation2 + $0x20] sm:$0xff]
        %v469 = vld [vmem:[#allocation2 + $0x28] sm:$0xff]
        %v470 = vld [vmem:[#allocation2 + $0x30] sm:$0xff]
        %v471 = vld [vmem:[#allocation2 + $0x38] sm:$0xff]
        %v472 = vld [vmem:[#allocation2 + $0x40] sm:$0xff]
        %v473 = vld [vmem:[#allocation2 + $0x48] sm:$0xff]
        %v474 = vld [vmem:[#allocation2 + $0x50] sm:$0xff]
        %v475 = vld [vmem:[#allocation2 + $0x58] sm:$0xff]
        %v476 = vld [vmem:[#allocation2 + $0x60] sm:$0xff]
        %v477 = vld [vmem:[#allocation2 + $0x68] sm:$0xff]
        %v478 = vld [vmem:[#allocation2 + $0x70] sm:$0xff]
        %v479 = vld [vmem:[#allocation2 + $0x78] sm:$0xff]
        %v480 = vld [vmem:[%s385] sm:$0xf]
        %v481 = vld [vmem:[%s385 + $0x4] sm:$0xf]
        %v482 = vld [vmem:[%s385 + $0x8] sm:$0xf]
        %v483 = vld [vmem:[%s385 + $0xc] sm:$0xf]
        %v484 = vld [vmem:[%s385 + $0x10] sm:$0xf]
        %v485 = vld [vmem:[%s385 + $0x14] sm:$0xf]
        %v486 = vld [vmem:[%s385 + $0x18] sm:$0xf]
        %v487 = vld [vmem:[%s385 + $0x1c] sm:$0xf]
        %v488 = vld [vmem:[%s385 + $0x20] sm:$0xf]
        %v489 = vld [vmem:[%s385 + $0x24] sm:$0xf]
        %v490 = vld [vmem:[%s385 + $0x28] sm:$0xf]
        %v491 = vld [vmem:[%s385 + $0x2c] sm:$0xf]
        %v492 = vld [vmem:[%s385 + $0x30] sm:$0xf]
        %v493 = vld [vmem:[%s385 + $0x34] sm:$0xf]
        %v494 = vld [vmem:[%s385 + $0x38] sm:$0xf]
        %v495 = vld [vmem:[%s385 + $0x3c] sm:$0xf]
        %v496 = vld [vmem:[%s429] sm:$0xf]
        %v497 = vld [vmem:[%s429 + $0x4] sm:$0xf]
        %v498 = vld [vmem:[%s429 + $0x8] sm:$0xf]
        %v499 = vld [vmem:[%s429 + $0xc] sm:$0xf]
        %v500 = vld [vmem:[%s429 + $0x10] sm:$0xf]
        %v501 = vld [vmem:[%s429 + $0x14] sm:$0xf]
        %v502 = vld [vmem:[%s429 + $0x18] sm:$0xf]
        %v503 = vld [vmem:[%s429 + $0x1c] sm:$0xf]
        %v504 = vld [vmem:[%s429 + $0x20] sm:$0xf]
        %v505 = vld [vmem:[%s429 + $0x24] sm:$0xf]
        %v506 = vld [vmem:[%s429 + $0x28] sm:$0xf]
        %v507 = vld [vmem:[%s429 + $0x2c] sm:$0xf]
        %v508 = vld [vmem:[%s429 + $0x30] sm:$0xf]
        %v509 = vld [vmem:[%s429 + $0x34] sm:$0xf]
        %v510 = vld [vmem:[%s429 + $0x38] sm:$0xf]
        %v511 = vld [vmem:[%s429 + $0x3c] sm:$0xf]
        %v528 = vunpack.c.l.b16 %v480
        %v529 = vunpack.c.l.b16 %v481
        %v530 = vunpack.c.l.b16 %v482
        %v531 = vunpack.c.l.b16 %v483
        %v532 = vunpack.c.l.b16 %v484
        %v533 = vunpack.c.l.b16 %v485
        %v534 = vunpack.c.l.b16 %v486
        %v535 = vunpack.c.l.b16 %v487
        %v536 = vunpack.c.l.b16 %v488
        %v537 = vunpack.c.l.b16 %v489
        %v538 = vunpack.c.l.b16 %v490
        %v539 = vunpack.c.l.b16 %v491
        %v540 = vunpack.c.l.b16 %v492
        %v541 = vunpack.c.l.b16 %v493
        %v542 = vunpack.c.l.b16 %v494
        %v543 = vunpack.c.l.b16 %v495
        %v544 = vpack.c.b16 %v529, %v528
        %v545 = vpack.c.b16 %v531, %v530
        %v546 = vpack.c.b16 %v533, %v532
        %v547 = vpack.c.b16 %v535, %v534
        %v548 = vpack.c.b16 %v537, %v536
        %v549 = vpack.c.b16 %v539, %v538
        %v550 = vpack.c.b16 %v541, %v540
        %v551 = vpack.c.b16 %v543, %v542
        %v576 = vunpack.c.l.b16 %v496
        %v577 = vunpack.c.l.b16 %v497
        %v578 = vunpack.c.l.b16 %v498
        %v579 = vunpack.c.l.b16 %v499
        %v580 = vunpack.c.l.b16 %v500
        %v581 = vunpack.c.l.b16 %v501
        %v582 = vunpack.c.l.b16 %v502
        %v583 = vunpack.c.l.b16 %v503
        %v584 = vunpack.c.l.b16 %v504
        %v585 = vunpack.c.l.b16 %v505
        %v586 = vunpack.c.l.b16 %v506
        %v587 = vunpack.c.l.b16 %v507
        %v588 = vunpack.c.l.b16 %v508
        %v589 = vunpack.c.l.b16 %v509
        %v590 = vunpack.c.l.b16 %v510
        %v591 = vunpack.c.l.b16 %v511
        %v592 = vpack.c.b16 %v577, %v576
        %v593 = vpack.c.b16 %v579, %v578
        %v594 = vpack.c.b16 %v581, %v580
        %v595 = vpack.c.b16 %v583, %v582
        %v596 = vpack.c.b16 %v585, %v584
        %v597 = vpack.c.b16 %v587, %v586
        %v598 = vpack.c.b16 %v589, %v588
        %v599 = vpack.c.b16 %v591, %v590
        %608 = vmatprep.subr.bf16.mxu0 0
        %609 = vmatpush1.bf16.msra.mxu0 %v592
        %610 = vmatprep.subr.bf16.mxu0 0
        %611 = vmatpush1.bf16.msra.mxu0 %v593
        %612 = vmatprep.subr.bf16.mxu0 0
        %613 = vmatpush1.bf16.msra.mxu0 %v594
        %614 = vmatprep.subr.bf16.mxu0 0
        %615 = vmatpush1.bf16.msra.mxu0 %v595
        %616 = vmatprep.subr.bf16.mxu0 0
        %617 = vmatpush1.bf16.msra.mxu0 %v596
        %618 = vmatprep.subr.bf16.mxu0 0
        %619 = vmatpush1.bf16.msra.mxu0 %v597
        %620 = vmatprep.subr.bf16.mxu0 0
        %621 = vmatpush1.bf16.msra.mxu0 %v598
        %622 = vmatprep.subr.bf16.mxu0 0
        %623 = vmatpush1.bf16.msra.mxu0 %v599
        %624 = vmatprep.subr.bf16.mxu0 0
        %625 = vmatpush1.bf16.msra.mxu0 0
        %626 = vmatprep.subr.bf16.mxu0 0
        %627 = vmatpush1.bf16.msra.mxu0 0
        %628 = vmatprep.subr.bf16.mxu0 0
        %629 = vmatpush1.bf16.msra.mxu0 0
        %630 = vmatprep.subr.bf16.mxu0 0
        %631 = vmatpush1.bf16.msra.mxu0 0
        %632 = vmatprep.subr.bf16.mxu0 0
        %633 = vmatpush1.bf16.msra.mxu0 0
        %634 = vmatprep.subr.bf16.mxu0 0
        %635 = vmatpush1.bf16.msra.mxu0 0
        %636 = vmatprep.subr.bf16.mxu0 0
        %637 = vmatpush1.bf16.msra.mxu0 0
        %638 = vmatprep.subr.bf16.mxu0 0
        %639 = vmatpush1.bf16.msra.mxu0 0
        %640 = vmatprep.mubr.bf16.mxu0 0
        %641 = vmatmul.mubr.bf16.gmra.mrb[0].mxu0 %v544
        %v642 = vpop.f32.mrb[0].mxu0
        %v643 = vadd.f32 0.0, %v642
        %v644 = vpop.f32.mrb[0].mxu0
        %v645 = vpop.f32.mrb[0].mxu0
        %v646 = vadd.f32 0.0, %v645
        %v647 = vpop.f32.mrb[0].mxu0
        %648 = vmatprep.mubr.bf16.mxu0 0
        %649 = vmatmul.mubr.bf16.gmra.mrb[0].mxu0 %v545
        %v650 = vpop.f32.mrb[0].mxu0
        %v651 = vadd.f32 0.0, %v650
        %v652 = vpop.f32.mrb[0].mxu0
        %v653 = vpop.f32.mrb[0].mxu0
        %v654 = vadd.f32 0.0, %v653
        %v655 = vpop.f32.mrb[0].mxu0
        %656 = vmatprep.mubr.bf16.mxu0 0
        %657 = vmatmul.mubr.bf16.gmra.mrb[0].mxu0 %v546
        %v658 = vpop.f32.mrb[0].mxu0
        %v659 = vadd.f32 0.0, %v658
        %v660 = vpop.f32.mrb[0].mxu0
        %v661 = vpop.f32.mrb[0].mxu0
        %v662 = vadd.f32 0.0, %v661
        %v663 = vpop.f32.mrb[0].mxu0
        %664 = vmatprep.mubr.bf16.mxu0 0
        %665 = vmatmul.mubr.bf16.gmra.mrb[0].mxu0 %v547
        %v666 = vpop.f32.mrb[0].mxu0
        %v667 = vadd.f32 0.0, %v666
        %v668 = vpop.f32.mrb[0].mxu0
        %v669 = vpop.f32.mrb[0].mxu0
        %v670 = vadd.f32 0.0, %v669
        %v671 = vpop.f32.mrb[0].mxu0
        %672 = vmatprep.mubr.bf16.mxu0 0
        %673 = vmatmul.mubr.bf16.gmra.mrb[0].mxu0 %v548
        %v674 = vpop.f32.mrb[0].mxu0
        %v675 = vadd.f32 0.0, %v674
        %v676 = vpop.f32.mrb[0].mxu0
        %v677 = vpop.f32.mrb[0].mxu0
        %v678 = vadd.f32 0.0, %v677
        %v679 = vpop.f32.mrb[0].mxu0
        %680 = vmatprep.mubr.bf16.mxu0 0
        %681 = vmatmul.mubr.bf16.gmra.mrb[0].mxu0 %v549
        %v682 = vpop.f32.mrb[0].mxu0
        %v683 = vadd.f32 0.0, %v682
        %v684 = vpop.f32.mrb[0].mxu0
        %v685 = vpop.f32.mrb[0].mxu0
        %v686 = vadd.f32 0.0, %v685
        %v687 = vpop.f32.mrb[0].mxu0
        %688 = vmatprep.mubr.bf16.mxu0 0
        %689 = vmatmul.mubr.bf16.gmra.mrb[0].mxu0 %v550
        %v690 = vpop.f32.mrb[0].mxu0
        %v691 = vadd.f32 0.0, %v690
        %v692 = vpop.f32.mrb[0].mxu0
        %v693 = vpop.f32.mrb[0].mxu0
        %v694 = vadd.f32 0.0, %v693
        %v695 = vpop.f32.mrb[0].mxu0
        %696 = vmatprep.mubr.bf16.mxu0 0
        %697 = vmatmul.mubr.bf16.gmra.mrb[0].mxu0 %v551
        %v698 = vpop.f32.mrb[0].mxu0
        %v699 = vadd.f32 0.0, %v698
        %v700 = vpop.f32.mrb[0].mxu0
        %v701 = vpop.f32.mrb[0].mxu0
        %v702 = vadd.f32 0.0, %v701
        %v703 = vpop.f32.mrb[0].mxu0
        %704 = vdwg.mxu0
        %v705 = vadd.f32 %v464, %v643
        %v706 = vadd.f32 %v465, %v646
        %v707 = vadd.f32 %v466, %v651
        %v708 = vadd.f32 %v467, %v654
        %v709 = vadd.f32 %v468, %v659
        %v710 = vadd.f32 %v469, %v662
        %v711 = vadd.f32 %v470, %v667
        %v712 = vadd.f32 %v471, %v670
        %v713 = vadd.f32 %v472, %v675
        %v714 = vadd.f32 %v473, %v678
        %v715 = vadd.f32 %v474, %v683
        %v716 = vadd.f32 %v475, %v686
        %v717 = vadd.f32 %v476, %v691
        %v718 = vadd.f32 %v477, %v694
        %v719 = vadd.f32 %v478, %v699
        %v720 = vadd.f32 %v479, %v702
        %721 = vst [vmem:[#allocation2] sm:$0xff] %v705
        %722 = vst [vmem:[#allocation2 + $0x8] sm:$0xff] %v706
        %723 = vst [vmem:[#allocation2 + $0x10] sm:$0xff] %v707
        %724 = vst [vmem:[#allocation2 + $0x18] sm:$0xff] %v708
        %725 = vst [vmem:[#allocation2 + $0x20] sm:$0xff] %v709
        %726 = vst [vmem:[#allocation2 + $0x28] sm:$0xff] %v710
        %727 = vst [vmem:[#allocation2 + $0x30] sm:$0xff] %v711
        %728 = vst [vmem:[#allocation2 + $0x38] sm:$0xff] %v712
        %729 = vst [vmem:[#allocation2 + $0x40] sm:$0xff] %v713
        %730 = vst [vmem:[#allocation2 + $0x48] sm:$0xff] %v714
        %731 = vst [vmem:[#allocation2 + $0x50] sm:$0xff] %v715
        %732 = vst [vmem:[#allocation2 + $0x58] sm:$0xff] %v716
        %733 = vst [vmem:[#allocation2 + $0x60] sm:$0xff] %v717
        %734 = vst [vmem:[#allocation2 + $0x68] sm:$0xff] %v718
        %735 = vst [vmem:[#allocation2 + $0x70] sm:$0xff] %v719
        %736 = vst [vmem:[#allocation2 + $0x78] sm:$0xff] %v720
        %p737 = scmp.eq.s32.totalorder %s23, 1
        // Predicated region
        $region94: #{equiv_set_gnn_forward.5} parent=84 // pred_check
          %p738 = pneg %p737
        $region95: #{equiv_set_gnn_forward.5} parent=84 // pred_check_branch
          %740 = sbr.rel (%p738) target = $region97
        $region96: #{equiv_set_gnn_forward.5} parent=84 // pred_region
          %v741 = vld [vmem:[#allocation2] sm:$0xff]
          %v742 = vld [vmem:[#allocation2 + $0x8] sm:$0xff]
          %v743 = vld [vmem:[#allocation2 + $0x10] sm:$0xff]
          %v744 = vld [vmem:[#allocation2 + $0x18] sm:$0xff]
          %v745 = vld [vmem:[#allocation2 + $0x20] sm:$0xff]
          %v746 = vld [vmem:[#allocation2 + $0x28] sm:$0xff]
          %v747 = vld [vmem:[#allocation2 + $0x30] sm:$0xff]
          %v748 = vld [vmem:[#allocation2 + $0x38] sm:$0xff]
          %v749 = vld [vmem:[#allocation2 + $0x40] sm:$0xff]
          %v750 = vld [vmem:[#allocation2 + $0x48] sm:$0xff]
          %v751 = vld [vmem:[#allocation2 + $0x50] sm:$0xff]
          %v752 = vld [vmem:[#allocation2 + $0x58] sm:$0xff]
          %v753 = vld [vmem:[#allocation2 + $0x60] sm:$0xff]
          %v754 = vld [vmem:[#allocation2 + $0x68] sm:$0xff]
          %v755 = vld [vmem:[#allocation2 + $0x70] sm:$0xff]
          %v756 = vld [vmem:[#allocation2 + $0x78] sm:$0xff]
          %v757 = vmul.f32 %v741, 0.5
          %v758 = vmul.f32 %v742, 0.5
          %v759 = vmul.f32 %v743, 0.5
          %v760 = vmul.f32 %v744, 0.5
          %v761 = vmul.f32 %v745, 0.5
          %v762 = vmul.f32 %v746, 0.5
          %v763 = vmul.f32 %v747, 0.5
          %v764 = vmul.f32 %v748, 0.5
          %v765 = vmul.f32 %v749, 0.5
          %v766 = vmul.f32 %v750, 0.5
          %v767 = vmul.f32 %v751, 0.5
          %v768 = vmul.f32 %v752, 0.5
          %v769 = vmul.f32 %v753, 0.5
          %v770 = vmul.f32 %v754, 0.5
          %v771 = vmul.f32 %v755, 0.5
          %v772 = vmul.f32 %v756, 0.5
          %v773 = vld [vmem:[%s435] sm:$0xff]
          %v774 = vld [vmem:[%s435 + $0x8] sm:$0xff]
          %v775 = vld [vmem:[%s435 + $0x10] sm:$0xff]
          %v776 = vld [vmem:[%s435 + $0x18] sm:$0xff]
          %v777 = vld [vmem:[%s435 + $0x20] sm:$0xff]
          %v778 = vld [vmem:[%s435 + $0x28] sm:$0xff]
          %v779 = vld [vmem:[%s435 + $0x30] sm:$0xff]
          %v780 = vld [vmem:[%s435 + $0x38] sm:$0xff]
          %v781 = vld [vmem:[%s435 + $0x40] sm:$0xff]
          %v782 = vld [vmem:[%s435 + $0x48] sm:$0xff]
          %v783 = vld [vmem:[%s435 + $0x50] sm:$0xff]
          %v784 = vld [vmem:[%s435 + $0x58] sm:$0xff]
          %v785 = vld [vmem:[%s435 + $0x60] sm:$0xff]
          %v786 = vld [vmem:[%s435 + $0x68] sm:$0xff]
          %v787 = vld [vmem:[%s435 + $0x70] sm:$0xff]
          %v788 = vld [vmem:[%s435 + $0x78] sm:$0xff]
          %v789 = vmul.f32 %v773, 0.5
          %v790 = vmul.f32 %v774, 0.5
          %v791 = vmul.f32 %v775, 0.5
          %v792 = vmul.f32 %v776, 0.5
          %v793 = vmul.f32 %v777, 0.5
          %v794 = vmul.f32 %v778, 0.5
          %v795 = vmul.f32 %v779, 0.5
          %v796 = vmul.f32 %v780, 0.5
          %v797 = vmul.f32 %v781, 0.5
          %v798 = vmul.f32 %v782, 0.5
          %v799 = vmul.f32 %v783, 0.5
          %v800 = vmul.f32 %v784, 0.5
          %v801 = vmul.f32 %v785, 0.5
          %v802 = vmul.f32 %v786, 0.5
          %v803 = vmul.f32 %v787, 0.5
          %v804 = vmul.f32 %v788, 0.5
          %v805 = vadd.f32 %v757, %v789
          %v806 = vadd.f32 %v758, %v790
          %v807 = vadd.f32 %v759, %v791
          %v808 = vadd.f32 %v760, %v792
          %v809 = vadd.f32 %v761, %v793
          %v810 = vadd.f32 %v762, %v794
          %v811 = vadd.f32 %v763, %v795
          %v812 = vadd.f32 %v764, %v796
          %v813 = vadd.f32 %v765, %v797
          %v814 = vadd.f32 %v766, %v798
          %v815 = vadd.f32 %v767, %v799
          %v816 = vadd.f32 %v768, %v800
          %v817 = vadd.f32 %v769, %v801
          %v818 = vadd.f32 %v770, %v802
          %v819 = vadd.f32 %v771, %v803
          %v820 = vadd.f32 %v772, %v804
          %v821 = vld [vmem:[%s3] sm:$0xff]
          %v822 = vld [vmem:[%s3 + $0x8] sm:$0xff]
          %v823 = vld [vmem:[%s3 + $0x10] sm:$0xff]
          %v824 = vld [vmem:[%s3 + $0x18] sm:$0xff]
          %v825 = vld [vmem:[%s3 + $0x20] sm:$0xff]
          %v826 = vld [vmem:[%s3 + $0x28] sm:$0xff]
          %v827 = vld [vmem:[%s3 + $0x30] sm:$0xff]
          %v828 = vld [vmem:[%s3 + $0x38] sm:$0xff]
          %v829 = vld [vmem:[%s3 + $0x40] sm:$0xff]
          %v830 = vld [vmem:[%s3 + $0x48] sm:$0xff]
          %v831 = vld [vmem:[%s3 + $0x50] sm:$0xff]
          %v832 = vld [vmem:[%s3 + $0x58] sm:$0xff]
          %v833 = vld [vmem:[%s3 + $0x60] sm:$0xff]
          %v834 = vld [vmem:[%s3 + $0x68] sm:$0xff]
          %v835 = vld [vmem:[%s3 + $0x70] sm:$0xff]
          %v836 = vld [vmem:[%s3 + $0x78] sm:$0xff]
          %v837 = vld [vmem:[%s4] sm:$0x1]
          %v839 = vlaneseq
          %v840 = vshrl.u32 %v839, 7
          %v841 = vsub.s32 0, %v840
          %v842 = vrot.slane %v837, %v841
          %844 = vmatprep.subr.mxu0 0.0
          %845 = vmatpush1.msra.mxu0 %v821
          %846 = vmatprep.subr.mxu0 0.0
          %847 = vmatpush1.msra.mxu0 %v822
          %848 = vmatprep.subr.mxu0 0.0
          %849 = vmatpush1.msra.mxu0 %v823
          %850 = vmatprep.subr.mxu0 0.0
          %851 = vmatpush1.msra.mxu0 %v824
          %852 = vmatprep.subr.mxu0 0.0
          %853 = vmatpush1.msra.mxu0 %v825
          %854 = vmatprep.subr.mxu0 0.0
          %855 = vmatpush1.msra.mxu0 %v826
          %856 = vmatprep.subr.mxu0 0.0
          %857 = vmatpush1.msra.mxu0 %v827
          %858 = vmatprep.subr.mxu0 0.0
          %859 = vmatpush1.msra.mxu0 %v828
          %860 = vmatprep.subr.mxu0 0.0
          %861 = vmatpush1.msra.mxu0 %v829
          %862 = vmatprep.subr.mxu0 0.0
          %863 = vmatpush1.msra.mxu0 %v830
          %864 = vmatprep.subr.mxu0 0.0
          %865 = vmatpush1.msra.mxu0 %v831
          %866 = vmatprep.subr.mxu0 0.0
          %867 = vmatpush1.msra.mxu0 %v832
          %868 = vmatprep.subr.mxu0 0.0
          %869 = vmatpush1.msra.mxu0 %v833
          %870 = vmatprep.subr.mxu0 0.0
          %871 = vmatpush1.msra.mxu0 %v834
          %872 = vmatprep.subr.mxu0 0.0
          %873 = vmatpush1.msra.mxu0 %v835
          %874 = vmatprep.subr.mxu0 0.0
          %875 = vmatpush1.msra.mxu0 %v836
          %876 = vmatprep.subr.mxu0 0.0
          %877 = vmatpush1.msra.mxu0 0.0
          %878 = vmatprep.subr.mxu0 0.0
          %879 = vmatpush1.msra.mxu0 0.0
          %880 = vmatprep.subr.mxu0 0.0
          %881 = vmatpush1.msra.mxu0 0.0
          %882 = vmatprep.subr.mxu0 0.0
          %883 = vmatpush1.msra.mxu0 0.0
          %884 = vmatprep.subr.mxu0 0.0
          %885 = vmatpush1.msra.mxu0 0.0
          %886 = vmatprep.subr.mxu0 0.0
          %887 = vmatpush1.msra.mxu0 0.0
          %888 = vmatprep.subr.mxu0 0.0
          %889 = vmatpush1.msra.mxu0 0.0
          %890 = vmatprep.subr.mxu0 0.0
          %891 = vmatpush1.msra.mxu0 0.0
          %892 = vmatprep.subr.mxu0 0.0
          %893 = vmatpush1.msra.mxu0 0.0
          %894 = vmatprep.subr.mxu0 0.0
          %895 = vmatpush1.msra.mxu0 0.0
          %896 = vmatprep.subr.mxu0 0.0
          %897 = vmatpush1.msra.mxu0 0.0
          %898 = vmatprep.subr.mxu0 0.0
          %899 = vmatpush1.msra.mxu0 0.0
          %900 = vmatprep.subr.mxu0 0.0
          %901 = vmatpush1.msra.mxu0 0.0
          %902 = vmatprep.subr.mxu0 0.0
          %903 = vmatpush1.msra.mxu0 0.0
          %904 = vmatprep.subr.mxu0 0.0
          %905 = vmatpush1.msra.mxu0 0.0
          %906 = vmatprep.subr.mxu0 0.0
          %907 = vmatpush1.msra.mxu0 0.0
          %908 = vmatprep.mubr.f32.mxu0 0.0
          %909 = vmatmul.mubr.f32.gmra.mrb[0].mxu0 %v805
          %v910 = vpop.f32.mrb[0].mxu0
          %v911 = vadd.f32 %v842, %v910
          %v912 = vpop.f32.mrb[0].mxu0
          %913 = vmatprep.mubr.f32.mxu0 0.0
          %914 = vmatmul.mubr.f32.gmra.mrb[0].mxu0 %v806
          %v915 = vpop.f32.mrb[0].mxu0
          %v916 = vadd.f32 %v842, %v915
          %v917 = vpop.f32.mrb[0].mxu0
          %918 = vmatprep.mubr.f32.mxu0 0.0
          %919 = vmatmul.mubr.f32.gmra.mrb[0].mxu0 %v807
          %v920 = vpop.f32.mrb[0].mxu0
          %v921 = vadd.f32 %v842, %v920
          %v922 = vpop.f32.mrb[0].mxu0
          %923 = vmatprep.mubr.f32.mxu0 0.0
          %924 = vmatmul.mubr.f32.gmra.mrb[0].mxu0 %v808
          %v925 = vpop.f32.mrb[0].mxu0
          %v926 = vadd.f32 %v842, %v925
          %v927 = vpop.f32.mrb[0].mxu0
          %928 = vmatprep.mubr.f32.mxu0 0.0
          %929 = vmatmul.mubr.f32.gmra.mrb[0].mxu0 %v809
          %v930 = vpop.f32.mrb[0].mxu0
          %v931 = vadd.f32 %v842, %v930
          %v932 = vpop.f32.mrb[0].mxu0
          %933 = vmatprep.mubr.f32.mxu0 0.0
          %934 = vmatmul.mubr.f32.gmra.mrb[0].mxu0 %v810
          %v935 = vpop.f32.mrb[0].mxu0
          %v936 = vadd.f32 %v842, %v935
          %v937 = vpop.f32.mrb[0].mxu0
          %938 = vmatprep.mubr.f32.mxu0 0.0
          %939 = vmatmul.mubr.f32.gmra.mrb[0].mxu0 %v811
          %v940 = vpop.f32.mrb[0].mxu0
          %v941 = vadd.f32 %v842, %v940
          %v942 = vpop.f32.mrb[0].mxu0
          %943 = vmatprep.mubr.f32.mxu0 0.0
          %944 = vmatmul.mubr.f32.gmra.mrb[0].mxu0 %v812
          %v945 = vpop.f32.mrb[0].mxu0
          %v946 = vadd.f32 %v842, %v945
          %v947 = vpop.f32.mrb[0].mxu0
          %948 = vmatprep.mubr.f32.mxu0 0.0
          %949 = vmatmul.mubr.f32.gmra.mrb[0].mxu0 %v813
          %v950 = vpop.f32.mrb[0].mxu0
          %v951 = vadd.f32 %v842, %v950
          %v952 = vpop.f32.mrb[0].mxu0
          %953 = vmatprep.mubr.f32.mxu0 0.0
          %954 = vmatmul.mubr.f32.gmra.mrb[0].mxu0 %v814
          %v955 = vpop.f32.mrb[0].mxu0
          %v956 = vadd.f32 %v842, %v955
          %v957 = vpop.f32.mrb[0].mxu0
          %958 = vmatprep.mubr.f32.mxu0 0.0
          %959 = vmatmul.mubr.f32.gmra.mrb[0].mxu0 %v815
          %v960 = vpop.f32.mrb[0].mxu0
          %v961 = vadd.f32 %v842, %v960
          %v962 = vpop.f32.mrb[0].mxu0
          %963 = vmatprep.mubr.f32.mxu0 0.0
          %964 = vmatmul.mubr.f32.gmra.mrb[0].mxu0 %v816
          %v965 = vpop.f32.mrb[0].mxu0
          %v966 = vadd.f32 %v842, %v965
          %v967 = vpop.f32.mrb[0].mxu0
          %968 = vmatprep.mubr.f32.mxu0 0.0
          %969 = vmatmul.mubr.f32.gmra.mrb[0].mxu0 %v817
          %v970 = vpop.f32.mrb[0].mxu0
          %v971 = vadd.f32 %v842, %v970
          %v972 = vpop.f32.mrb[0].mxu0
          %973 = vmatprep.mubr.f32.mxu0 0.0
          %974 = vmatmul.mubr.f32.gmra.mrb[0].mxu0 %v818
          %v975 = vpop.f32.mrb[0].mxu0
          %v976 = vadd.f32 %v842, %v975
          %v977 = vpop.f32.mrb[0].mxu0
          %978 = vmatprep.mubr.f32.mxu0 0.0
          %979 = vmatmul.mubr.f32.gmra.mrb[0].mxu0 %v819
          %v980 = vpop.f32.mrb[0].mxu0
          %v981 = vadd.f32 %v842, %v980
          %v982 = vpop.f32.mrb[0].mxu0
          %983 = vmatprep.mubr.f32.mxu0 0.0
          %984 = vmatmul.mubr.f32.gmra.mrb[0].mxu0 %v820
          %v985 = vpop.f32.mrb[0].mxu0
          %v986 = vadd.f32 %v842, %v985
          %v987 = vpop.f32.mrb[0].mxu0
          %988 = vdwg.mxu0
          %v989 = vmax.f32 %v911, 0.0
          %v990 = vmax.f32 %v916, 0.0
          %v991 = vmax.f32 %v921, 0.0
          %v992 = vmax.f32 %v926, 0.0
          %v993 = vmax.f32 %v931, 0.0
          %v994 = vmax.f32 %v936, 0.0
          %v995 = vmax.f32 %v941, 0.0
          %v996 = vmax.f32 %v946, 0.0
          %v997 = vmax.f32 %v951, 0.0
          %v998 = vmax.f32 %v956, 0.0
          %v999 = vmax.f32 %v961, 0.0
          %v1000 = vmax.f32 %v966, 0.0
          %v1001 = vmax.f32 %v971, 0.0
          %v1002 = vmax.f32 %v976, 0.0
          %v1003 = vmax.f32 %v981, 0.0
          %v1004 = vmax.f32 %v986, 0.0
          %v1005 = vld [vmem:[%s5] sm:$0xff]
          %v1006 = vld [vmem:[%s5 + $0x8] sm:$0xff]
          %v1007 = vld [vmem:[%s5 + $0x10] sm:$0xff]
          %v1008 = vld [vmem:[%s5 + $0x18] sm:$0xff]
          %v1009 = vld [vmem:[%s5 + $0x20] sm:$0xff]
          %v1010 = vld [vmem:[%s5 + $0x28] sm:$0xff]
          %v1011 = vld [vmem:[%s5 + $0x30] sm:$0xff]
          %v1012 = vld [vmem:[%s5 + $0x38] sm:$0xff]
          %v1013 = vld [vmem:[%s5 + $0x40] sm:$0xff]
          %v1014 = vld [vmem:[%s5 + $0x48] sm:$0xff]
          %v1015 = vld [vmem:[%s5 + $0x50] sm:$0xff]
          %v1016 = vld [vmem:[%s5 + $0x58] sm:$0xff]
          %v1017 = vld [vmem:[%s5 + $0x60] sm:$0xff]
          %v1018 = vld [vmem:[%s5 + $0x68] sm:$0xff]
          %v1019 = vld [vmem:[%s5 + $0x70] sm:$0xff]
          %v1020 = vld [vmem:[%s5 + $0x78] sm:$0xff]
          %v1021 = vld [vmem:[%s6] sm:$0x1]
          %v1023 = vlaneseq
          %v1024 = vshrl.u32 %v1023, 7
          %v1025 = vsub.s32 0, %v1024
          %v1026 = vrot.slane %v1021, %v1025
          %1028 = vmatprep.subr.mxu0 0.0
          %1029 = vmatpush1.msra.mxu0 %v1005
          %1030 = vmatprep.subr.mxu0 0.0
          %1031 = vmatpush1.msra.mxu0 %v1006
          %1032 = vmatprep.subr.mxu0 0.0
          %1033 = vmatpush1.msra.mxu0 %v1007
          %1034 = vmatprep.subr.mxu0 0.0
          %1035 = vmatpush1.msra.mxu0 %v1008
          %1036 = vmatprep.subr.mxu0 0.0
          %1037 = vmatpush1.msra.mxu0 %v1009
          %1038 = vmatprep.subr.mxu0 0.0
          %1039 = vmatpush1.msra.mxu0 %v1010
          %1040 = vmatprep.subr.mxu0 0.0
          %1041 = vmatpush1.msra.mxu0 %v1011
          %1042 = vmatprep.subr.mxu0 0.0
          %1043 = vmatpush1.msra.mxu0 %v1012
          %1044 = vmatprep.subr.mxu0 0.0
          %1045 = vmatpush1.msra.mxu0 %v1013
          %1046 = vmatprep.subr.mxu0 0.0
          %1047 = vmatpush1.msra.mxu0 %v1014
          %1048 = vmatprep.subr.mxu0 0.0
          %1049 = vmatpush1.msra.mxu0 %v1015
          %1050 = vmatprep.subr.mxu0 0.0
          %1051 = vmatpush1.msra.mxu0 %v1016
          %1052 = vmatprep.subr.mxu0 0.0
          %1053 = vmatpush1.msra.mxu0 %v1017
          %1054 = vmatprep.subr.mxu0 0.0
          %1055 = vmatpush1.msra.mxu0 %v1018
          %1056 = vmatprep.subr.mxu0 0.0
          %1057 = vmatpush1.msra.mxu0 %v1019
          %1058 = vmatprep.subr.mxu0 0.0
          %1059 = vmatpush1.msra.mxu0 %v1020
          %1060 = vmatprep.subr.mxu0 0.0
          %1061 = vmatpush1.msra.mxu0 0.0
          %1062 = vmatprep.subr.mxu0 0.0
          %1063 = vmatpush1.msra.mxu0 0.0
          %1064 = vmatprep.subr.mxu0 0.0
          %1065 = vmatpush1.msra.mxu0 0.0
          %1066 = vmatprep.subr.mxu0 0.0
          %1067 = vmatpush1.msra.mxu0 0.0
          %1068 = vmatprep.subr.mxu0 0.0
          %1069 = vmatpush1.msra.mxu0 0.0
          %1070 = vmatprep.subr.mxu0 0.0
          %1071 = vmatpush1.msra.mxu0 0.0
          %1072 = vmatprep.subr.mxu0 0.0
          %1073 = vmatpush1.msra.mxu0 0.0
          %1074 = vmatprep.subr.mxu0 0.0
          %1075 = vmatpush1.msra.mxu0 0.0
          %1076 = vmatprep.subr.mxu0 0.0
          %1077 = vmatpush1.msra.mxu0 0.0
          %1078 = vmatprep.subr.mxu0 0.0
          %1079 = vmatpush1.msra.mxu0 0.0
          %1080 = vmatprep.subr.mxu0 0.0
          %1081 = vmatpush1.msra.mxu0 0.0
          %1082 = vmatprep.subr.mxu0 0.0
          %1083 = vmatpush1.msra.mxu0 0.0
          %1084 = vmatprep.subr.mxu0 0.0
          %1085 = vmatpush1.msra.mxu0 0.0
          %1086 = vmatprep.subr.mxu0 0.0
          %1087 = vmatpush1.msra.mxu0 0.0
          %1088 = vmatprep.subr.mxu0 0.0
          %1089 = vmatpush1.msra.mxu0 0.0
          %1090 = vmatprep.subr.mxu0 0.0
          %1091 = vmatpush1.msra.mxu0 0.0
          %1092 = vmatprep.mubr.f32.mxu0 0.0
          %1093 = vmatmul.mubr.f32.gmra.mrb[0].mxu0 %v989
          %v1094 = vpop.f32.mrb[0].mxu0
          %v1095 = vadd.f32 %v1026, %v1094
          %v1096 = vpop.f32.mrb[0].mxu0
          %1097 = vmatprep.mubr.f32.mxu0 0.0
          %1098 = vmatmul.mubr.f32.gmra.mrb[0].mxu0 %v990
          %v1099 = vpop.f32.mrb[0].mxu0
          %v1100 = vadd.f32 %v1026, %v1099
          %v1101 = vpop.f32.mrb[0].mxu0
          %1102 = vmatprep.mubr.f32.mxu0 0.0
          %1103 = vmatmul.mubr.f32.gmra.mrb[0].mxu0 %v991
          %v1104 = vpop.f32.mrb[0].mxu0
          %v1105 = vadd.f32 %v1026, %v1104
          %v1106 = vpop.f32.mrb[0].mxu0
          %1107 = vmatprep.mubr.f32.mxu0 0.0
          %1108 = vmatmul.mubr.f32.gmra.mrb[0].mxu0 %v992
          %v1109 = vpop.f32.mrb[0].mxu0
          %v1110 = vadd.f32 %v1026, %v1109
          %v1111 = vpop.f32.mrb[0].mxu0
          %1112 = vmatprep.mubr.f32.mxu0 0.0
          %1113 = vmatmul.mubr.f32.gmra.mrb[0].mxu0 %v993
          %v1114 = vpop.f32.mrb[0].mxu0
          %v1115 = vadd.f32 %v1026, %v1114
          %v1116 = vpop.f32.mrb[0].mxu0
          %1117 = vmatprep.mubr.f32.mxu0 0.0
          %1118 = vmatmul.mubr.f32.gmra.mrb[0].mxu0 %v994
          %v1119 = vpop.f32.mrb[0].mxu0
          %v1120 = vadd.f32 %v1026, %v1119
          %v1121 = vpop.f32.mrb[0].mxu0
          %1122 = vmatprep.mubr.f32.mxu0 0.0
          %1123 = vmatmul.mubr.f32.gmra.mrb[0].mxu0 %v995
          %v1124 = vpop.f32.mrb[0].mxu0
          %v1125 = vadd.f32 %v1026, %v1124
          %v1126 = vpop.f32.mrb[0].mxu0
          %1127 = vmatprep.mubr.f32.mxu0 0.0
          %1128 = vmatmul.mubr.f32.gmra.mrb[0].mxu0 %v996
          %v1129 = vpop.f32.mrb[0].mxu0
          %v1130 = vadd.f32 %v1026, %v1129
          %v1131 = vpop.f32.mrb[0].mxu0
          %1132 = vmatprep.mubr.f32.mxu0 0.0
          %1133 = vmatmul.mubr.f32.gmra.mrb[0].mxu0 %v997
          %v1134 = vpop.f32.mrb[0].mxu0
          %v1135 = vadd.f32 %v1026, %v1134
          %v1136 = vpop.f32.mrb[0].mxu0
          %1137 = vmatprep.mubr.f32.mxu0 0.0
          %1138 = vmatmul.mubr.f32.gmra.mrb[0].mxu0 %v998
          %v1139 = vpop.f32.mrb[0].mxu0
          %v1140 = vadd.f32 %v1026, %v1139
          %v1141 = vpop.f32.mrb[0].mxu0
          %1142 = vmatprep.mubr.f32.mxu0 0.0
          %1143 = vmatmul.mubr.f32.gmra.mrb[0].mxu0 %v999
          %v1144 = vpop.f32.mrb[0].mxu0
          %v1145 = vadd.f32 %v1026, %v1144
          %v1146 = vpop.f32.mrb[0].mxu0
          %1147 = vmatprep.mubr.f32.mxu0 0.0
          %1148 = vmatmul.mubr.f32.gmra.mrb[0].mxu0 %v1000
          %v1149 = vpop.f32.mrb[0].mxu0
          %v1150 = vadd.f32 %v1026, %v1149
          %v1151 = vpop.f32.mrb[0].mxu0
          %1152 = vmatprep.mubr.f32.mxu0 0.0
          %1153 = vmatmul.mubr.f32.gmra.mrb[0].mxu0 %v1001
          %v1154 = vpop.f32.mrb[0].mxu0
          %v1155 = vadd.f32 %v1026, %v1154
          %v1156 = vpop.f32.mrb[0].mxu0
          %1157 = vmatprep.mubr.f32.mxu0 0.0
          %1158 = vmatmul.mubr.f32.gmra.mrb[0].mxu0 %v1002
          %v1159 = vpop.f32.mrb[0].mxu0
          %v1160 = vadd.f32 %v1026, %v1159
          %v1161 = vpop.f32.mrb[0].mxu0
          %1162 = vmatprep.mubr.f32.mxu0 0.0
          %1163 = vmatmul.mubr.f32.gmra.mrb[0].mxu0 %v1003
          %v1164 = vpop.f32.mrb[0].mxu0
          %v1165 = vadd.f32 %v1026, %v1164
          %v1166 = vpop.f32.mrb[0].mxu0
          %1167 = vmatprep.mubr.f32.mxu0 0.0
          %1168 = vmatmul.mubr.f32.gmra.mrb[0].mxu0 %v1004
          %v1169 = vpop.f32.mrb[0].mxu0
          %v1170 = vadd.f32 %v1026, %v1169
          %v1171 = vpop.f32.mrb[0].mxu0
          %1172 = vdwg.mxu0
          %v1173 = vmul.f32 %v805, 0.0
          %v1174 = vmul.f32 %v806, 0.0
          %v1175 = vmul.f32 %v807, 0.0
          %v1176 = vmul.f32 %v808, 0.0
          %v1177 = vmul.f32 %v809, 0.0
          %v1178 = vmul.f32 %v810, 0.0
          %v1179 = vmul.f32 %v811, 0.0
          %v1180 = vmul.f32 %v812, 0.0
          %v1181 = vmul.f32 %v813, 0.0
          %v1182 = vmul.f32 %v814, 0.0
          %v1183 = vmul.f32 %v815, 0.0
          %v1184 = vmul.f32 %v816, 0.0
          %v1185 = vmul.f32 %v817, 0.0
          %v1186 = vmul.f32 %v818, 0.0
          %v1187 = vmul.f32 %v819, 0.0
          %v1188 = vmul.f32 %v820, 0.0
          %v1189 = vadd.f32 %v1173, %v1095
          %v1190 = vadd.f32 %v1174, %v1100
          %v1191 = vadd.f32 %v1175, %v1105
          %v1192 = vadd.f32 %v1176, %v1110
          %v1193 = vadd.f32 %v1177, %v1115
          %v1194 = vadd.f32 %v1178, %v1120
          %v1195 = vadd.f32 %v1179, %v1125
          %v1196 = vadd.f32 %v1180, %v1130
          %v1197 = vadd.f32 %v1181, %v1135
          %v1198 = vadd.f32 %v1182, %v1140
          %v1199 = vadd.f32 %v1183, %v1145
          %v1200 = vadd.f32 %v1184, %v1150
          %v1201 = vadd.f32 %v1185, %v1155
          %v1202 = vadd.f32 %v1186, %v1160
          %v1203 = vadd.f32 %v1187, %v1165
          %v1204 = vadd.f32 %v1188, %v1170
          %1205 = vst [vmem:[%s441] sm:$0xff] %v1189
          %1206 = vst [vmem:[%s441 + $0x8] sm:$0xff] %v1190
          %1207 = vst [vmem:[%s441 + $0x10] sm:$0xff] %v1191
          %1208 = vst [vmem:[%s441 + $0x18] sm:$0xff] %v1192
          %1209 = vst [vmem:[%s441 + $0x20] sm:$0xff] %v1193
          %1210 = vst [vmem:[%s441 + $0x28] sm:$0xff] %v1194
          %1211 = vst [vmem:[%s441 + $0x30] sm:$0xff] %v1195
          %1212 = vst [vmem:[%s441 + $0x38] sm:$0xff] %v1196
          %1213 = vst [vmem:[%s441 + $0x40] sm:$0xff] %v1197
          %1214 = vst [vmem:[%s441 + $0x48] sm:$0xff] %v1198
          %1215 = vst [vmem:[%s441 + $0x50] sm:$0xff] %v1199
          %1216 = vst [vmem:[%s441 + $0x58] sm:$0xff] %v1200
          %1217 = vst [vmem:[%s441 + $0x60] sm:$0xff] %v1201
          %1218 = vst [vmem:[%s441 + $0x68] sm:$0xff] %v1202
          %1219 = vst [vmem:[%s441 + $0x70] sm:$0xff] %v1203
          %1220 = vst [vmem:[%s441 + $0x78] sm:$0xff] %v1204
        $region97: #{equiv_set_gnn_forward.5} parent=84 // pred_fallthru
          _
        %s1221 = smul.u32 16, %s22
        %p1222 = scmp.lt.s32.totalorder %s1221, 47
        %s1223 = scalar_select %p1222, %s1221, 47
        %s1224 = smul.addr %s1223, 8
        %s1225 = scalar_lea.vmem %s7, %s1224
        // Predicated region
        $region98: #{equiv_set_gnn_forward.5} parent=84 // pred_check
          %p1226 = pneg %p212
        $region99: #{equiv_set_gnn_forward.5} parent=84 // pred_check_branch
          %1228 = sbr.rel (%p1226) target = $region101
        $region100: #{equiv_set_gnn_forward.5} parent=84 // pred_region
          %s1229 = smul.u32 16, %s22
        $region101: #{equiv_set_gnn_forward.5} parent=84 // pred_fallthru
          _
      $region85: #{equiv_set_gnn_forward.5} parent=5 // pred_fallthru
        _
      %p1230 = scmp.le.s32.totalorder 2, %s13
      // Predicated region
      $region102: #{equiv_set_gnn_forward.5} parent=5 // pred_check
        %p1231 = pneg %p1230
      $region103: #{equiv_set_gnn_forward.5} parent=5 // pred_check_branch
        %1233 = sbr.rel (%p1231) target = $region105
      $region104: #{equiv_set_gnn_forward.5} parent=5 // pred_region
        %s1234 = ssub.s32 %s13, 2
        // Predicated region
        $region106: #{equiv_set_gnn_forward.5} parent=104 // pred_check
          %p1235 = pneg %p218
        $region107: #{equiv_set_gnn_forward.5} parent=104 // pred_check_branch
          %1237 = sbr.rel (%p1235) target = $region109
        $region108: #{equiv_set_gnn_forward.5} parent=104 // pred_region
          %s1238 = smul.u32 16, %s24
          %p1239 = scmp.lt.s32.totalorder %s1238, 47
          %s1240 = scalar_select %p1239, %s1238, 47
          %s1241 = smul.addr %s1240, 8
          %s1242 = scalar_lea.vmem %s7, %s1241
        $region109: #{equiv_set_gnn_forward.5} parent=104 // pred_fallthru
          _
      $region105: #{equiv_set_gnn_forward.5} parent=5 // pred_fallthru
        _
    $region6: #{equiv_set_gnn_forward.5} parent=1 // loop_footer
      %s17 = sadd.s32 1, %s13
    $region7: #{equiv_set_gnn_forward.5} parent=1 // loop_footer_branch
      %12 = sbr.rel target = $region3
    $region8: #{equiv_set_gnn_forward.5} parent=1 // loop_exit
      _

</llo_original>
